<compile_context>
chip_gen: v7x
topology: tpu7x:2x2x1
jax: 0.10.0
libtpu: 0.0.40
codegen_flags: <defaults>
</compile_context>

<pallas_src>
import functools
import math

import jax
import jax.numpy as jnp
import numpy as np
from jax import lax
from jax.experimental import pallas as pl
from jax.experimental.pallas import tpu as pltpu


# ---------------------------------------------------------------------------
# Fused MHA kernel: single invocation, all batches and heads inside.
# ---------------------------------------------------------------------------
def _mha_fused_kernel(x_ref, wqkv_ref, bqkv_ref, wo_ref, bo_ref,
                      out_ref, attw_ref, *, num_heads, L, S, N, compute_dtype):
    cd = compute_dtype
    E = wo_ref.shape[0]
    hd = E // num_heads
    NL = N * L
    NS = N * S

    # --- single fused in-projection -------------------------------------
    # x_ref rows are [query(N*L); key(N*S); value(N*S)], batch-major.
    # wqkv is (E, 3E) = [Wq^T*scale | Wk^T | Wv^T]; slice what we need.
    y = jnp.dot(x_ref[...], wqkv_ref[...],
                preferred_element_type=jnp.float32) + bqkv_ref[...]
    qp = y[:NL, :E]                    # (N*L, E), already scaled
    kp = y[NL:NL + NS, E:2 * E]        # (N*S, E)
    vp = y[NL + NS:, 2 * E:]           # (N*S, E)

    # --- per-head / per-batch attention (heads outer -> 1 lane slice per
    #     tensor per head; batch access is 8-row-aligned sublane slicing) ---
    head_ctx = []                                        # H x (N*L, hd)
    w_sum = [jnp.zeros((L, S), jnp.float32) for _ in range(N)]
    for h in range(num_heads):
        lo = h * hd
        qh = qp[:, lo:lo + hd]                           # (N*L, hd)
        kh = kp[:, lo:lo + hd]                           # (N*S, hd)
        vh = vp[:, lo:lo + hd]                           # (N*S, hd)
        ctx_n = []
        for n in range(N):
            qhn = qh[n * L:(n + 1) * L]                  # (L, hd)
            khn = kh[n * S:(n + 1) * S]                  # (S, hd)
            vhn = vh[n * S:(n + 1) * S]                  # (S, hd)
            # q @ k^T without an explicit transpose (contract dim 1 of both).
            s = lax.dot_general(qhn.astype(cd), khn.astype(cd),
                                (((1,), (1,)), ((), ())),
                                preferred_element_type=jnp.float32)  # (L, S)
            # numerically-stable softmax, EXACT divide (weights are returned).
            m = jnp.max(s, axis=-1, keepdims=True)
            e = jnp.exp(s - m)
            p = e / jnp.sum(e, axis=-1, keepdims=True)
            w_sum[n] = w_sum[n] + p
            ctx_n.append(jnp.dot(p.astype(cd), vhn.astype(cd),
                                 preferred_element_type=jnp.float32))  # (L, hd)
        head_ctx.append(jnp.concatenate(ctx_n, axis=0))  # (N*L, hd)

    # --- single fused output projection ----------------------------------
    ctx = jnp.concatenate(head_ctx, axis=-1)             # (N*L, E)
    out = jnp.dot(ctx.astype(cd), wo_ref[...],
                  preferred_element_type=jnp.float32) + bo_ref[...]
    out_ref[...] = out.astype(out_ref.dtype)             # (N*L, E)

    inv_h = 1.0 / num_heads
    for n in range(N):
        attw_ref[n] = (w_sum[n] * inv_h).astype(attw_ref.dtype)  # (L, S)


# ---------------------------------------------------------------------------
# Forward wrapper (weight prep + single grid-less pallas_call)
# ---------------------------------------------------------------------------
@functools.partial(jax.jit, static_argnums=(4, 5))
def multihead_attention_forward(query, key, value, params, num_heads,
                                compute_dtype=jnp.float32):
    L, N, E = query.shape
    S = key.shape[0]
    head_dim = E // num_heads
    assert head_dim * num_heads == E
    scaling = float(head_dim) ** -0.5

    w_in, b_in = params["in_proj_weight"], params["in_proj_bias"]   # (3E,E),(3E,)
    w_out, b_out = params["out_proj_weight"], params["out_proj_bias"]

    # Stacked (in, out)-layout projection weight; 1/sqrt(head_dim) folded into
    # the q block (weight AND bias, matching PyTorch's post-projection scale).
    wqkv = jnp.concatenate(
        [(w_in[:E] * scaling).T, w_in[E:2 * E].T, w_in[2 * E:].T], axis=1)  # (E,3E)
    bqkv = jnp.concatenate(
        [b_in[:E] * scaling, b_in[E:2 * E], b_in[2 * E:]]).reshape(1, 3 * E)
    wo_t = w_out.T                          # (E, E), (in, out) layout
    bo = b_out.reshape(1, E)

    # Batch-major rows, all three operands stacked along M so the kernel does a
    # single in-projection matmul.
    # TODO(synk): at production sizes, have callers provide batch-major (N,L,E)
    # inputs (or use a grid-(N,) variant whose DMA absorbs the layout change)
    # instead of paying these wrapper-side transposes.
    q2 = jnp.transpose(query, (1, 0, 2)).reshape(N * L, E)
    k2 = jnp.transpose(key, (1, 0, 2)).reshape(N * S, E)
    v2 = jnp.transpose(value, (1, 0, 2)).reshape(N * S, E)
    x_all = jnp.concatenate([q2, k2, v2], axis=0).astype(compute_dtype)

    kernel = functools.partial(_mha_fused_kernel, num_heads=num_heads,
                               L=L, S=S, N=N, compute_dtype=compute_dtype)
    vmem = pl.BlockSpec(memory_space=pltpu.MemorySpace.VMEM)  # whole array, no pipeline
    out2, attn_w = pl.pallas_call(
        kernel,
        in_specs=(vmem,) * 5,
        out_specs=(vmem, vmem),
        out_shape=(jax.ShapeDtypeStruct((N * L, E), query.dtype),
                   jax.ShapeDtypeStruct((N, L, S), jnp.float32)),
    )(x_all, wqkv.astype(compute_dtype), bqkv, wo_t.astype(compute_dtype), bo)

    out = jnp.transpose(out2.reshape(N, L, E), (1, 0, 2))   # (L, N, E)
    return out, attn_w                                       # attn_w: (N, L, S)


# ---------------------------------------------------------------------------
# Pure-JAX reference (mirrors the PyTorch code) for a correctness check
# ---------------------------------------------------------------------------
def reference_forward(query, key, value, params, num_heads):
    L, N, E = query.shape
    S = key.shape[0]
    hd = E // num_heads
    scaling = float(hd) ** -0.5
    w_in, b_in = params["in_proj_weight"], params["in_proj_bias"]
    w_out, b_out = params["out_proj_weight"], params["out_proj_bias"]

    q = query @ w_in[:E].T + b_in[:E]
    k = key @ w_in[E:2 * E].T + b_in[E:2 * E]
    v = value @ w_in[2 * E:].T + b_in[2 * E:]
    q = q * scaling
    q = q.reshape(L, N * num_heads, hd).transpose(1, 0, 2)
    k = k.reshape(S, N * num_heads, hd).transpose(1, 0, 2)
    v = v.reshape(S, N * num_heads, hd).transpose(1, 0, 2)
    s = jnp.einsum("bld,bsd->bls", q, k)
    p = jax.nn.softmax(s, axis=-1)
    o = jnp.einsum("bls,bsd->bld", p, v)
    o = o.transpose(1, 0, 2).reshape(L, N, E)
    o = o @ w_out.T + b_out
    w_avg = p.reshape(N, num_heads, L, S).sum(axis=1) / num_heads
    return o, w_avg


# ---------------------------------------------------------------------------
# Deterministic parameter init (xavier_uniform for weights, zeros for biases)
# ---------------------------------------------------------------------------
def init_params(key, embed_dim):
    k1, k2 = jax.random.split(key)
    fan_in, fan_out = embed_dim, 3 * embed_dim
    bound = math.sqrt(6.0 / (fan_in + fan_out))
    in_proj_weight = jax.random.uniform(
        k1, (3 * embed_dim, embed_dim), jnp.float32, -bound, bound)
    bound_o = math.sqrt(6.0 / (2 * embed_dim))
    out_proj_weight = jax.random.uniform(
        k2, (embed_dim, embed_dim), jnp.float32, -bound_o, bound_o)
    return {
        "in_proj_weight": in_proj_weight,
        "in_proj_bias": jnp.zeros((3 * embed_dim,), jnp.float32),
        "out_proj_weight": out_proj_weight,
        "out_proj_bias": jnp.zeros((embed_dim,), jnp.float32),
    }


if __name__ == "__main__":
    # small shapes consistent with the module: L=8, S=8, batch=2, embed=32, heads=4
    L, S, N, E, H = 8, 8, 2, 32, 4

    root = jax.random.PRNGKey(0)
    kq, kk, kv, kp = jax.random.split(root, 4)
    query = jax.random.normal(kq, (L, N, E), jnp.float32)
    key = jax.random.normal(kk, (S, N, E), jnp.float32)
    value = jax.random.normal(kv, (S, N, E), jnp.float32)
    params = init_params(kp, E)

    # compute_dtype=jnp.float32 for the tight demo check; use jnp.bfloat16 on
    # v6e/v7x in production (f32 accumulation is kept inside the kernel).
    out, attn_w = multihead_attention_forward(query, key, value, params, H,
                                              jnp.float32)
    out = jax.block_until_ready(out)
    attn_w = jax.block_until_ready(attn_w)

    ref_out, ref_w = reference_forward(query, key, value, params, H)
    assert out.shape == (L, N, E)
    assert attn_w.shape == (N, L, S)
    np.testing.assert_allclose(np.asarray(out), np.asarray(ref_out),
                               atol=1e-3, rtol=1e-3)
    np.testing.assert_allclose(np.asarray(attn_w), np.asarray(ref_w),
                               atol=1e-3, rtol=1e-3)

    print("KERNEL_OK")
</pallas_src>

<mosaic_0001>
module attributes {stable_mosaic.version = 11 : i64} {
  func.func @_mha_fused_kernel(%arg0: memref<48x32xf32, #tpu.memory_space<vmem>>, %arg1: memref<32x96xf32, #tpu.memory_space<vmem>>, %arg2: memref<1x96xf32, #tpu.memory_space<vmem>>, %arg3: memref<32x32xf32, #tpu.memory_space<vmem>>, %arg4: memref<1x32xf32, #tpu.memory_space<vmem>>, %arg5: memref<16x32xf32, #tpu.memory_space<vmem>>, %arg6: memref<2x8x8xf32, #tpu.memory_space<vmem>>) attributes {dimension_semantics = [], scalar_prefetch = 0 : i64, scratch_operands = 0 : i64, tpu.core_type = #tpu.core_type<tc>} {
    %c0 = arith.constant 0 : index
    %c0_0 = arith.constant 0 : index
    %0 = vector.load %arg0[%c0, %c0_0] : memref<48x32xf32, #tpu.memory_space<vmem>>, vector<48x32xf32>
    %c0_1 = arith.constant 0 : index
    %c0_2 = arith.constant 0 : index
    %1 = vector.load %arg1[%c0_1, %c0_2] : memref<32x96xf32, #tpu.memory_space<vmem>>, vector<32x96xf32>
    %cst = arith.constant dense<0.000000e+00> : vector<48x96xf32>
    %2 = tpu.matmul %0, %1, %cst {dimension_numbers = #tpu.dot_dimension_numbers<[1], [0], [0], [1], [0, 0, 1, 1], [], []>} : vector<48x32xf32>, vector<32x96xf32>, vector<48x96xf32> -> vector<48x96xf32>
    %c0_3 = arith.constant 0 : index
    %c0_4 = arith.constant 0 : index
    %3 = vector.load %arg2[%c0_3, %c0_4] : memref<1x96xf32, #tpu.memory_space<vmem>>, vector<1x96xf32>
    %4 = vector.broadcast %3 : vector<1x96xf32> to vector<48x96xf32>
    %5 = arith.addf %2, %4 : vector<48x96xf32>
    %6 = vector.extract_strided_slice %5 {offsets = [0, 0], sizes = [16, 32], strides = [1, 1]} : vector<48x96xf32> to vector<16x32xf32>
    %7 = vector.extract_strided_slice %5 {offsets = [16, 32], sizes = [16, 32], strides = [1, 1]} : vector<48x96xf32> to vector<16x32xf32>
    %8 = vector.extract_strided_slice %5 {offsets = [32, 64], sizes = [16, 32], strides = [1, 1]} : vector<48x96xf32> to vector<16x32xf32>
    %cst_5 = arith.constant 0.000000e+00 : f32
    %9 = vector.broadcast %cst_5 : f32 to vector<8x8xf32>
    %cst_6 = arith.constant 0.000000e+00 : f32
    %10 = vector.broadcast %cst_6 : f32 to vector<8x8xf32>
    %11 = vector.extract_strided_slice %6 {offsets = [0, 0], sizes = [16, 8], strides = [1, 1]} : vector<16x32xf32> to vector<16x8xf32>
    %12 = vector.extract_strided_slice %7 {offsets = [0, 0], sizes = [16, 8], strides = [1, 1]} : vector<16x32xf32> to vector<16x8xf32>
    %13 = vector.extract_strided_slice %8 {offsets = [0, 0], sizes = [16, 8], strides = [1, 1]} : vector<16x32xf32> to vector<16x8xf32>
    %14 = vector.extract_strided_slice %11 {offsets = [0, 0], sizes = [8, 8], strides = [1, 1]} : vector<16x8xf32> to vector<8x8xf32>
    %15 = vector.extract_strided_slice %12 {offsets = [0, 0], sizes = [8, 8], strides = [1, 1]} : vector<16x8xf32> to vector<8x8xf32>
    %16 = vector.extract_strided_slice %13 {offsets = [0, 0], sizes = [8, 8], strides = [1, 1]} : vector<16x8xf32> to vector<8x8xf32>
    %cst_7 = arith.constant dense<0.000000e+00> : vector<8x8xf32>
    %17 = tpu.matmul %14, %15, %cst_7 {dimension_numbers = #tpu.dot_dimension_numbers<[1], [1], [0], [0], [0, 0, 1, 0], [], []>} : vector<8x8xf32>, vector<8x8xf32>, vector<8x8xf32> -> vector<8x8xf32>
    %cst_8 = arith.constant dense<0xFF800000> : vector<8xf32>
    %18 = vector.multi_reduction <maximumf>, %17, %cst_8 [1] : vector<8x8xf32> to vector<8xf32>
    %19 = vector.shape_cast %18 : vector<8xf32> to vector<8x1xf32>
    %20 = vector.broadcast %19 : vector<8x1xf32> to vector<8x8xf32>
    %21 = arith.subf %17, %20 : vector<8x8xf32>
    %22 = math.exp %21 : vector<8x8xf32>
    %cst_9 = arith.constant dense<0.000000e+00> : vector<8xf32>
    %23 = vector.multi_reduction <add>, %22, %cst_9 [1] : vector<8x8xf32> to vector<8xf32>
    %24 = vector.shape_cast %23 : vector<8xf32> to vector<8x1xf32>
    %25 = vector.broadcast %24 : vector<8x1xf32> to vector<8x8xf32>
    %26 = arith.divf %22, %25 : vector<8x8xf32>
    %27 = arith.addf %9, %26 : vector<8x8xf32>
    %cst_10 = arith.constant dense<0.000000e+00> : vector<8x8xf32>
    %28 = tpu.matmul %26, %16, %cst_10 {dimension_numbers = #tpu.dot_dimension_numbers<[1], [0], [0], [1], [0, 0, 1, 1], [], []>} : vector<8x8xf32>, vector<8x8xf32>, vector<8x8xf32> -> vector<8x8xf32>
    %29 = vector.extract_strided_slice %11 {offsets = [8, 0], sizes = [8, 8], strides = [1, 1]} : vector<16x8xf32> to vector<8x8xf32>
    %30 = vector.extract_strided_slice %12 {offsets = [8, 0], sizes = [8, 8], strides = [1, 1]} : vector<16x8xf32> to vector<8x8xf32>
    %31 = vector.extract_strided_slice %13 {offsets = [8, 0], sizes = [8, 8], strides = [1, 1]} : vector<16x8xf32> to vector<8x8xf32>
    %cst_11 = arith.constant dense<0.000000e+00> : vector<8x8xf32>
    %32 = tpu.matmul %29, %30, %cst_11 {dimension_numbers = #tpu.dot_dimension_numbers<[1], [1], [0], [0], [0, 0, 1, 0], [], []>} : vector<8x8xf32>, vector<8x8xf32>, vector<8x8xf32> -> vector<8x8xf32>
    %cst_12 = arith.constant dense<0xFF800000> : vector<8xf32>
    %33 = vector.multi_reduction <maximumf>, %32, %cst_12 [1] : vector<8x8xf32> to vector<8xf32>
    %34 = vector.shape_cast %33 : vector<8xf32> to vector<8x1xf32>
    %35 = vector.broadcast %34 : vector<8x1xf32> to vector<8x8xf32>
    %36 = arith.subf %32, %35 : vector<8x8xf32>
    %37 = math.exp %36 : vector<8x8xf32>
    %cst_13 = arith.constant dense<0.000000e+00> : vector<8xf32>
    %38 = vector.multi_reduction <add>, %37, %cst_13 [1] : vector<8x8xf32> to vector<8xf32>
    %39 = vector.shape_cast %38 : vector<8xf32> to vector<8x1xf32>
    %40 = vector.broadcast %39 : vector<8x1xf32> to vector<8x8xf32>
    %41 = arith.divf %37, %40 : vector<8x8xf32>
    %42 = arith.addf %10, %41 : vector<8x8xf32>
    %cst_14 = arith.constant dense<0.000000e+00> : vector<8x8xf32>
    %43 = tpu.matmul %41, %31, %cst_14 {dimension_numbers = #tpu.dot_dimension_numbers<[1], [0], [0], [1], [0, 0, 1, 1], [], []>} : vector<8x8xf32>, vector<8x8xf32>, vector<8x8xf32> -> vector<8x8xf32>
    %44 = tpu.concatenate %28, %43 in 0 : vector<8x8xf32>, vector<8x8xf32> -> vector<16x8xf32>
    %45 = vector.extract_strided_slice %6 {offsets = [0, 8], sizes = [16, 8], strides = [1, 1]} : vector<16x32xf32> to vector<16x8xf32>
    %46 = vector.extract_strided_slice %7 {offsets = [0, 8], sizes = [16, 8], strides = [1, 1]} : vector<16x32xf32> to vector<16x8xf32>
    %47 = vector.extract_strided_slice %8 {offsets = [0, 8], sizes = [16, 8], strides = [1, 1]} : vector<16x32xf32> to vector<16x8xf32>
    %48 = vector.extract_strided_slice %45 {offsets = [0, 0], sizes = [8, 8], strides = [1, 1]} : vector<16x8xf32> to vector<8x8xf32>
    %49 = vector.extract_strided_slice %46 {offsets = [0, 0], sizes = [8, 8], strides = [1, 1]} : vector<16x8xf32> to vector<8x8xf32>
    %50 = vector.extract_strided_slice %47 {offsets = [0, 0], sizes = [8, 8], strides = [1, 1]} : vector<16x8xf32> to vector<8x8xf32>
    %cst_15 = arith.constant dense<0.000000e+00> : vector<8x8xf32>
    %51 = tpu.matmul %48, %49, %cst_15 {dimension_numbers = #tpu.dot_dimension_numbers<[1], [1], [0], [0], [0, 0, 1, 0], [], []>} : vector<8x8xf32>, vector<8x8xf32>, vector<8x8xf32> -> vector<8x8xf32>
    %cst_16 = arith.constant dense<0xFF800000> : vector<8xf32>
    %52 = vector.multi_reduction <maximumf>, %51, %cst_16 [1] : vector<8x8xf32> to vector<8xf32>
    %53 = vector.shape_cast %52 : vector<8xf32> to vector<8x1xf32>
    %54 = vector.broadcast %53 : vector<8x1xf32> to vector<8x8xf32>
    %55 = arith.subf %51, %54 : vector<8x8xf32>
    %56 = math.exp %55 : vector<8x8xf32>
    %cst_17 = arith.constant dense<0.000000e+00> : vector<8xf32>
    %57 = vector.multi_reduction <add>, %56, %cst_17 [1] : vector<8x8xf32> to vector<8xf32>
    %58 = vector.shape_cast %57 : vector<8xf32> to vector<8x1xf32>
    %59 = vector.broadcast %58 : vector<8x1xf32> to vector<8x8xf32>
    %60 = arith.divf %56, %59 : vector<8x8xf32>
    %61 = arith.addf %27, %60 : vector<8x8xf32>
    %cst_18 = arith.constant dense<0.000000e+00> : vector<8x8xf32>
    %62 = tpu.matmul %60, %50, %cst_18 {dimension_numbers = #tpu.dot_dimension_numbers<[1], [0], [0], [1], [0, 0, 1, 1], [], []>} : vector<8x8xf32>, vector<8x8xf32>, vector<8x8xf32> -> vector<8x8xf32>
    %63 = vector.extract_strided_slice %45 {offsets = [8, 0], sizes = [8, 8], strides = [1, 1]} : vector<16x8xf32> to vector<8x8xf32>
    %64 = vector.extract_strided_slice %46 {offsets = [8, 0], sizes = [8, 8], strides = [1, 1]} : vector<16x8xf32> to vector<8x8xf32>
    %65 = vector.extract_strided_slice %47 {offsets = [8, 0], sizes = [8, 8], strides = [1, 1]} : vector<16x8xf32> to vector<8x8xf32>
    %cst_19 = arith.constant dense<0.000000e+00> : vector<8x8xf32>
    %66 = tpu.matmul %63, %64, %cst_19 {dimension_numbers = #tpu.dot_dimension_numbers<[1], [1], [0], [0], [0, 0, 1, 0], [], []>} : vector<8x8xf32>, vector<8x8xf32>, vector<8x8xf32> -> vector<8x8xf32>
    %cst_20 = arith.constant dense<0xFF800000> : vector<8xf32>
    %67 = vector.multi_reduction <maximumf>, %66, %cst_20 [1] : vector<8x8xf32> to vector<8xf32>
    %68 = vector.shape_cast %67 : vector<8xf32> to vector<8x1xf32>
    %69 = vector.broadcast %68 : vector<8x1xf32> to vector<8x8xf32>
    %70 = arith.subf %66, %69 : vector<8x8xf32>
    %71 = math.exp %70 : vector<8x8xf32>
    %cst_21 = arith.constant dense<0.000000e+00> : vector<8xf32>
    %72 = vector.multi_reduction <add>, %71, %cst_21 [1] : vector<8x8xf32> to vector<8xf32>
    %73 = vector.shape_cast %72 : vector<8xf32> to vector<8x1xf32>
    %74 = vector.broadcast %73 : vector<8x1xf32> to vector<8x8xf32>
    %75 = arith.divf %71, %74 : vector<8x8xf32>
    %76 = arith.addf %42, %75 : vector<8x8xf32>
    %cst_22 = arith.constant dense<0.000000e+00> : vector<8x8xf32>
    %77 = tpu.matmul %75, %65, %cst_22 {dimension_numbers = #tpu.dot_dimension_numbers<[1], [0], [0], [1], [0, 0, 1, 1], [], []>} : vector<8x8xf32>, vector<8x8xf32>, vector<8x8xf32> -> vector<8x8xf32>
    %78 = tpu.concatenate %62, %77 in 0 : vector<8x8xf32>, vector<8x8xf32> -> vector<16x8xf32>
    %79 = vector.extract_strided_slice %6 {offsets = [0, 16], sizes = [16, 8], strides = [1, 1]} : vector<16x32xf32> to vector<16x8xf32>
    %80 = vector.extract_strided_slice %7 {offsets = [0, 16], sizes = [16, 8], strides = [1, 1]} : vector<16x32xf32> to vector<16x8xf32>
    %81 = vector.extract_strided_slice %8 {offsets = [0, 16], sizes = [16, 8], strides = [1, 1]} : vector<16x32xf32> to vector<16x8xf32>
    %82 = vector.extract_strided_slice %79 {offsets = [0, 0], sizes = [8, 8], strides = [1, 1]} : vector<16x8xf32> to vector<8x8xf32>
    %83 = vector.extract_strided_slice %80 {offsets = [0, 0], sizes = [8, 8], strides = [1, 1]} : vector<16x8xf32> to vector<8x8xf32>
    %84 = vector.extract_strided_slice %81 {offsets = [0, 0], sizes = [8, 8], strides = [1, 1]} : vector<16x8xf32> to vector<8x8xf32>
    %cst_23 = arith.constant dense<0.000000e+00> : vector<8x8xf32>
    %85 = tpu.matmul %82, %83, %cst_23 {dimension_numbers = #tpu.dot_dimension_numbers<[1], [1], [0], [0], [0, 0, 1, 0], [], []>} : vector<8x8xf32>, vector<8x8xf32>, vector<8x8xf32> -> vector<8x8xf32>
    %cst_24 = arith.constant dense<0xFF800000> : vector<8xf32>
    %86 = vector.multi_reduction <maximumf>, %85, %cst_24 [1] : vector<8x8xf32> to vector<8xf32>
    %87 = vector.shape_cast %86 : vector<8xf32> to vector<8x1xf32>
    %88 = vector.broadcast %87 : vector<8x1xf32> to vector<8x8xf32>
    %89 = arith.subf %85, %88 : vector<8x8xf32>
    %90 = math.exp %89 : vector<8x8xf32>
    %cst_25 = arith.constant dense<0.000000e+00> : vector<8xf32>
    %91 = vector.multi_reduction <add>, %90, %cst_25 [1] : vector<8x8xf32> to vector<8xf32>
    %92 = vector.shape_cast %91 : vector<8xf32> to vector<8x1xf32>
    %93 = vector.broadcast %92 : vector<8x1xf32> to vector<8x8xf32>
    %94 = arith.divf %90, %93 : vector<8x8xf32>
    %95 = arith.addf %61, %94 : vector<8x8xf32>
    %cst_26 = arith.constant dense<0.000000e+00> : vector<8x8xf32>
    %96 = tpu.matmul %94, %84, %cst_26 {dimension_numbers = #tpu.dot_dimension_numbers<[1], [0], [0], [1], [0, 0, 1, 1], [], []>} : vector<8x8xf32>, vector<8x8xf32>, vector<8x8xf32> -> vector<8x8xf32>
    %97 = vector.extract_strided_slice %79 {offsets = [8, 0], sizes = [8, 8], strides = [1, 1]} : vector<16x8xf32> to vector<8x8xf32>
    %98 = vector.extract_strided_slice %80 {offsets = [8, 0], sizes = [8, 8], strides = [1, 1]} : vector<16x8xf32> to vector<8x8xf32>
    %99 = vector.extract_strided_slice %81 {offsets = [8, 0], sizes = [8, 8], strides = [1, 1]} : vector<16x8xf32> to vector<8x8xf32>
    %cst_27 = arith.constant dense<0.000000e+00> : vector<8x8xf32>
    %100 = tpu.matmul %97, %98, %cst_27 {dimension_numbers = #tpu.dot_dimension_numbers<[1], [1], [0], [0], [0, 0, 1, 0], [], []>} : vector<8x8xf32>, vector<8x8xf32>, vector<8x8xf32> -> vector<8x8xf32>
    %cst_28 = arith.constant dense<0xFF800000> : vector<8xf32>
    %101 = vector.multi_reduction <maximumf>, %100, %cst_28 [1] : vector<8x8xf32> to vector<8xf32>
    %102 = vector.shape_cast %101 : vector<8xf32> to vector<8x1xf32>
    %103 = vector.broadcast %102 : vector<8x1xf32> to vector<8x8xf32>
    %104 = arith.subf %100, %103 : vector<8x8xf32>
    %105 = math.exp %104 : vector<8x8xf32>
    %cst_29 = arith.constant dense<0.000000e+00> : vector<8xf32>
    %106 = vector.multi_reduction <add>, %105, %cst_29 [1] : vector<8x8xf32> to vector<8xf32>
    %107 = vector.shape_cast %106 : vector<8xf32> to vector<8x1xf32>
    %108 = vector.broadcast %107 : vector<8x1xf32> to vector<8x8xf32>
    %109 = arith.divf %105, %108 : vector<8x8xf32>
    %110 = arith.addf %76, %109 : vector<8x8xf32>
    %cst_30 = arith.constant dense<0.000000e+00> : vector<8x8xf32>
    %111 = tpu.matmul %109, %99, %cst_30 {dimension_numbers = #tpu.dot_dimension_numbers<[1], [0], [0], [1], [0, 0, 1, 1], [], []>} : vector<8x8xf32>, vector<8x8xf32>, vector<8x8xf32> -> vector<8x8xf32>
    %112 = tpu.concatenate %96, %111 in 0 : vector<8x8xf32>, vector<8x8xf32> -> vector<16x8xf32>
    %113 = vector.extract_strided_slice %6 {offsets = [0, 24], sizes = [16, 8], strides = [1, 1]} : vector<16x32xf32> to vector<16x8xf32>
    %114 = vector.extract_strided_slice %7 {offsets = [0, 24], sizes = [16, 8], strides = [1, 1]} : vector<16x32xf32> to vector<16x8xf32>
    %115 = vector.extract_strided_slice %8 {offsets = [0, 24], sizes = [16, 8], strides = [1, 1]} : vector<16x32xf32> to vector<16x8xf32>
    %116 = vector.extract_strided_slice %113 {offsets = [0, 0], sizes = [8, 8], strides = [1, 1]} : vector<16x8xf32> to vector<8x8xf32>
    %117 = vector.extract_strided_slice %114 {offsets = [0, 0], sizes = [8, 8], strides = [1, 1]} : vector<16x8xf32> to vector<8x8xf32>
    %118 = vector.extract_strided_slice %115 {offsets = [0, 0], sizes = [8, 8], strides = [1, 1]} : vector<16x8xf32> to vector<8x8xf32>
    %cst_31 = arith.constant dense<0.000000e+00> : vector<8x8xf32>
    %119 = tpu.matmul %116, %117, %cst_31 {dimension_numbers = #tpu.dot_dimension_numbers<[1], [1], [0], [0], [0, 0, 1, 0], [], []>} : vector<8x8xf32>, vector<8x8xf32>, vector<8x8xf32> -> vector<8x8xf32>
    %cst_32 = arith.constant dense<0xFF800000> : vector<8xf32>
    %120 = vector.multi_reduction <maximumf>, %119, %cst_32 [1] : vector<8x8xf32> to vector<8xf32>
    %121 = vector.shape_cast %120 : vector<8xf32> to vector<8x1xf32>
    %122 = vector.broadcast %121 : vector<8x1xf32> to vector<8x8xf32>
    %123 = arith.subf %119, %122 : vector<8x8xf32>
    %124 = math.exp %123 : vector<8x8xf32>
    %cst_33 = arith.constant dense<0.000000e+00> : vector<8xf32>
    %125 = vector.multi_reduction <add>, %124, %cst_33 [1] : vector<8x8xf32> to vector<8xf32>
    %126 = vector.shape_cast %125 : vector<8xf32> to vector<8x1xf32>
    %127 = vector.broadcast %126 : vector<8x1xf32> to vector<8x8xf32>
    %128 = arith.divf %124, %127 : vector<8x8xf32>
    %129 = arith.addf %95, %128 : vector<8x8xf32>
    %cst_34 = arith.constant dense<0.000000e+00> : vector<8x8xf32>
    %130 = tpu.matmul %128, %118, %cst_34 {dimension_numbers = #tpu.dot_dimension_numbers<[1], [0], [0], [1], [0, 0, 1, 1], [], []>} : vector<8x8xf32>, vector<8x8xf32>, vector<8x8xf32> -> vector<8x8xf32>
    %131 = vector.extract_strided_slice %113 {offsets = [8, 0], sizes = [8, 8], strides = [1, 1]} : vector<16x8xf32> to vector<8x8xf32>
    %132 = vector.extract_strided_slice %114 {offsets = [8, 0], sizes = [8, 8], strides = [1, 1]} : vector<16x8xf32> to vector<8x8xf32>
    %133 = vector.extract_strided_slice %115 {offsets = [8, 0], sizes = [8, 8], strides = [1, 1]} : vector<16x8xf32> to vector<8x8xf32>
    %cst_35 = arith.constant dense<0.000000e+00> : vector<8x8xf32>
    %134 = tpu.matmul %131, %132, %cst_35 {dimension_numbers = #tpu.dot_dimension_numbers<[1], [1], [0], [0], [0, 0, 1, 0], [], []>} : vector<8x8xf32>, vector<8x8xf32>, vector<8x8xf32> -> vector<8x8xf32>
    %cst_36 = arith.constant dense<0xFF800000> : vector<8xf32>
    %135 = vector.multi_reduction <maximumf>, %134, %cst_36 [1] : vector<8x8xf32> to vector<8xf32>
    %136 = vector.shape_cast %135 : vector<8xf32> to vector<8x1xf32>
    %137 = vector.broadcast %136 : vector<8x1xf32> to vector<8x8xf32>
    %138 = arith.subf %134, %137 : vector<8x8xf32>
    %139 = math.exp %138 : vector<8x8xf32>
    %cst_37 = arith.constant dense<0.000000e+00> : vector<8xf32>
    %140 = vector.multi_reduction <add>, %139, %cst_37 [1] : vector<8x8xf32> to vector<8xf32>
    %141 = vector.shape_cast %140 : vector<8xf32> to vector<8x1xf32>
    %142 = vector.broadcast %141 : vector<8x1xf32> to vector<8x8xf32>
    %143 = arith.divf %139, %142 : vector<8x8xf32>
    %144 = arith.addf %110, %143 : vector<8x8xf32>
    %cst_38 = arith.constant dense<0.000000e+00> : vector<8x8xf32>
    %145 = tpu.matmul %143, %133, %cst_38 {dimension_numbers = #tpu.dot_dimension_numbers<[1], [0], [0], [1], [0, 0, 1, 1], [], []>} : vector<8x8xf32>, vector<8x8xf32>, vector<8x8xf32> -> vector<8x8xf32>
    %146 = tpu.concatenate %130, %145 in 0 : vector<8x8xf32>, vector<8x8xf32> -> vector<16x8xf32>
    %147 = tpu.concatenate %44, %78, %112, %146 in 1 : vector<16x8xf32>, vector<16x8xf32>, vector<16x8xf32>, vector<16x8xf32> -> vector<16x32xf32>
    %c0_39 = arith.constant 0 : index
    %c0_40 = arith.constant 0 : index
    %148 = vector.load %arg3[%c0_39, %c0_40] : memref<32x32xf32, #tpu.memory_space<vmem>>, vector<32x32xf32>
    %cst_41 = arith.constant dense<0.000000e+00> : vector<16x32xf32>
    %149 = tpu.matmul %147, %148, %cst_41 {dimension_numbers = #tpu.dot_dimension_numbers<[1], [0], [0], [1], [0, 0, 1, 1], [], []>} : vector<16x32xf32>, vector<32x32xf32>, vector<16x32xf32> -> vector<16x32xf32>
    %c0_42 = arith.constant 0 : index
    %c0_43 = arith.constant 0 : index
    %150 = vector.load %arg4[%c0_42, %c0_43] : memref<1x32xf32, #tpu.memory_space<vmem>>, vector<1x32xf32>
    %151 = vector.broadcast %150 : vector<1x32xf32> to vector<16x32xf32>
    %152 = arith.addf %149, %151 : vector<16x32xf32>
    %c0_44 = arith.constant 0 : index
    %c0_45 = arith.constant 0 : index
    %153 = vector.load %arg5[%c0_44, %c0_45] : memref<16x32xf32, #tpu.memory_space<vmem>>, vector<16x32xf32>
    tpu.vector_store %arg5[%c0_44, %c0_45], %152 {strides = array<i32>} : memref<16x32xf32, #tpu.memory_space<vmem>>, vector<16x32xf32>,
    %cst_46 = arith.constant 2.500000e-01 : f32
    %154 = vector.broadcast %cst_46 : f32 to vector<8x8xf32>
    %155 = arith.mulf %129, %154 : vector<8x8xf32>
    %c0_47 = arith.constant 0 : index
    %c0_48 = arith.constant 0 : index
    %c0_49 = arith.constant 0 : index
    %156 = vector.load %arg6[%c0_47, %c0_48, %c0_49] : memref<2x8x8xf32, #tpu.memory_space<vmem>>, vector<1x8x8xf32>
    %157 = vector.shape_cast %156 : vector<1x8x8xf32> to vector<8x8xf32>
    %158 = vector.shape_cast %155 : vector<8x8xf32> to vector<1x8x8xf32>
    tpu.vector_store %arg6[%c0_47, %c0_48, %c0_49], %158 {strides = array<i32>} : memref<2x8x8xf32, #tpu.memory_space<vmem>>, vector<1x8x8xf32>,
    %cst_50 = arith.constant 2.500000e-01 : f32
    %159 = vector.broadcast %cst_50 : f32 to vector<8x8xf32>
    %160 = arith.mulf %144, %159 : vector<8x8xf32>
    %c1 = arith.constant 1 : index
    %c0_51 = arith.constant 0 : index
    %c0_52 = arith.constant 0 : index
    %161 = vector.load %arg6[%c1, %c0_51, %c0_52] : memref<2x8x8xf32, #tpu.memory_space<vmem>>, vector<1x8x8xf32>
    %162 = vector.shape_cast %161 : vector<1x8x8xf32> to vector<8x8xf32>
    %163 = vector.shape_cast %160 : vector<8x8xf32> to vector<1x8x8xf32>
    tpu.vector_store %arg6[%c1, %c0_51, %c0_52], %163 {strides = array<i32>} : memref<2x8x8xf32, #tpu.memory_space<vmem>>, vector<1x8x8xf32>,
    return
  }
}

</mosaic_0001>

<llo_original>
// kernel: multihead_attention_forward.1
$region0: #{multihead_attention_forward.1}
  #allocation0 [shape = 'u32[]', space=smem, size = 0x4, offset = 0x4, fixed_abs, tag = 'smem constant byte address 0x4 - core index']
  #allocation1 [shape = 'u32[144,128]{1,0:T(1,128)}', space=vmem, size = 0x12000, scoped, tag = 'internal scratch']
  %s0 = inlined_call_operand.vmem [shape: f32[48,32], index: 0, kind: input, shape index: {}]
  %s1 = inlined_call_operand.vmem [shape: f32[32,96], index: 1, kind: input, shape index: {}]
  %s2 = inlined_call_operand.vmem [shape: f32[1,96], index: 2, kind: input, shape index: {}]
  %s3 = inlined_call_operand.vmem [shape: f32[32,32], index: 3, kind: input, shape index: {}]
  %s4 = inlined_call_operand.vmem [shape: f32[1,32], index: 4, kind: input, shape index: {}]
  %s5 = inlined_call_operand.vmem [shape: f32[16,32], index: 5, kind: output, shape index: {0}]
  %s6 = inlined_call_operand.hbm [shape: f32[2,8,8], index: 6, kind: output, shape index: {1}]
  %7 = xla_tuple %s5, %s6
  %s8 = sld [smem:[#allocation0]]
  $region38: #{multihead_attention_forward.1} parent=0
    _
  %s10 = ssub.s32 1, %s8
  %s11 = scalar_select 0, %s10, %s8
  $region1: #{multihead_attention_forward.1} parent=0
    #allocation2 [shape = 'u8[8192]{0}', space=vmem, size = 0x2000, scoped, tag = 'output window, operand 1, single buffered']
    #allocation3 [shape = 's32[1]{0}', space=sflag, size = 0x4, scoped, tag = 'scoped memory for multihead_attention_forward.1']
    %12 = vsyncpa [#allocation3], 0
    // Predicated region
    $region2: #{multihead_attention_forward.1} parent=1 // pred_check
      _
    $region3: #{multihead_attention_forward.1} parent=1 // pred_check_branch
      %14 = sbr.rel (0) target = $region5
    $region4: #{multihead_attention_forward.1} parent=1 // pred_region
      _
    $region5: #{multihead_attention_forward.1} parent=1 // pred_fallthru
      _
    // Predicated region
    $region6: #{multihead_attention_forward.1} parent=1 // pred_check
      _
    $region7: #{multihead_attention_forward.1} parent=1 // pred_check_branch
      %16 = sbr.rel (0) target = $region9
    $region8: #{multihead_attention_forward.1} parent=1 // pred_region
      _
    $region9: #{multihead_attention_forward.1} parent=1 // pred_fallthru
      _
    // Predicated region
    $region10: #{multihead_attention_forward.1} parent=1 // pred_check
      _
    $region11: #{multihead_attention_forward.1} parent=1 // pred_check_branch
      %18 = sbr.rel (0) target = $region13
    $region12: #{multihead_attention_forward.1} parent=1 // pred_region
      _
    $region13: #{multihead_attention_forward.1} parent=1 // pred_fallthru
      _
    // Predicated region
    $region14: #{multihead_attention_forward.1} parent=1 // pred_check
      _
    $region15: #{multihead_attention_forward.1} parent=1 // pred_check_branch
      %20 = sbr.rel (0) target = $region17
    $region16: #{multihead_attention_forward.1} parent=1 // pred_region
      _
    $region17: #{multihead_attention_forward.1} parent=1 // pred_fallthru
      _
    // Predicated region
    $region18: #{multihead_attention_forward.1} parent=1 // pred_check
      _
    $region19: #{multihead_attention_forward.1} parent=1 // pred_check_branch
      %22 = sbr.rel (0) target = $region21
    $region20: #{multihead_attention_forward.1} parent=1 // pred_region
      _
    $region21: #{multihead_attention_forward.1} parent=1 // pred_fallthru
      _
    %v23 = vld [vmem:[%s0] sm:$0xff]
    %v24 = vld [vmem:[%s0 + $0x8] sm:$0xff]
    %v25 = vld [vmem:[%s0 + $0x10] sm:$0xff]
    %v26 = vld [vmem:[%s0 + $0x18] sm:$0xff]
    %v27 = vld [vmem:[%s0 + $0x20] sm:$0xff]
    %v28 = vld [vmem:[%s0 + $0x28] sm:$0xff]
    %v29 = vld [vmem:[%s1] sm:$0xff]
    %v30 = vld [vmem:[%s1 + $0x8] sm:$0xff]
    %v31 = vld [vmem:[%s1 + $0x10] sm:$0xff]
    %v32 = vld [vmem:[%s1 + $0x18] sm:$0xff]
    %v33 = vld [vmem:[%s2] sm:$0x1]
    %v35 = vlaneseq
    %v36 = vshrl.u32 %v35, 7
    %v37 = vsub.s32 0, %v36
    %v38 = vrot.slane %v33, %v37
    %vm40 = vcmask 261120
    %v42 = vsel %vm40, %v23, 0
    %v45 = vsel %vm40, %v24, 0
    %v48 = vsel %vm40, %v25, 0
    %v51 = vsel %vm40, %v26, 0
    %v54 = vsel %vm40, %v27, 0
    %v57 = vsel %vm40, %v28, 0
    %59 = vmatprep.subr.mxu0 0.0
    %60 = vmatpush1.msra.mxu0 %v29
    %61 = vmatprep.subr.mxu0 0.0
    %62 = vmatpush1.msra.mxu0 %v30
    %63 = vmatprep.subr.mxu0 0.0
    %64 = vmatpush1.msra.mxu0 %v31
    %65 = vmatprep.subr.mxu0 0.0
    %66 = vmatpush1.msra.mxu0 %v32
    %67 = vmatprep.subr.mxu0 0.0
    %68 = vmatpush1.msra.mxu0 0.0
    %69 = vmatprep.subr.mxu0 0.0
    %70 = vmatpush1.msra.mxu0 0.0
    %71 = vmatprep.subr.mxu0 0.0
    %72 = vmatpush1.msra.mxu0 0.0
    %73 = vmatprep.subr.mxu0 0.0
    %74 = vmatpush1.msra.mxu0 0.0
    %75 = vmatprep.subr.mxu0 0.0
    %76 = vmatpush1.msra.mxu0 0.0
    %77 = vmatprep.subr.mxu0 0.0
    %78 = vmatpush1.msra.mxu0 0.0
    %79 = vmatprep.subr.mxu0 0.0
    %80 = vmatpush1.msra.mxu0 0.0
    %81 = vmatprep.subr.mxu0 0.0
    %82 = vmatpush1.msra.mxu0 0.0
    %83 = vmatprep.subr.mxu0 0.0
    %84 = vmatpush1.msra.mxu0 0.0
    %85 = vmatprep.subr.mxu0 0.0
    %86 = vmatpush1.msra.mxu0 0.0
    %87 = vmatprep.subr.mxu0 0.0
    %88 = vmatpush1.msra.mxu0 0.0
    %89 = vmatprep.subr.mxu0 0.0
    %90 = vmatpush1.msra.mxu0 0.0
    %91 = vmatprep.subr.mxu0 0.0
    %92 = vmatpush1.msra.mxu0 0.0
    %93 = vmatprep.subr.mxu0 0.0
    %94 = vmatpush1.msra.mxu0 0.0
    %95 = vmatprep.subr.mxu0 0.0
    %96 = vmatpush1.msra.mxu0 0.0
    %97 = vmatprep.subr.mxu0 0.0
    %98 = vmatpush1.msra.mxu0 0.0
    %99 = vmatprep.subr.mxu0 0.0
    %100 = vmatpush1.msra.mxu0 0.0
    %101 = vmatprep.subr.mxu0 0.0
    %102 = vmatpush1.msra.mxu0 0.0
    %103 = vmatprep.subr.mxu0 0.0
    %104 = vmatpush1.msra.mxu0 0.0
    %105 = vmatprep.subr.mxu0 0.0
    %106 = vmatpush1.msra.mxu0 0.0
    %107 = vmatprep.subr.mxu0 0.0
    %108 = vmatpush1.msra.mxu0 0.0
    %109 = vmatprep.subr.mxu0 0.0
    %110 = vmatpush1.msra.mxu0 0.0
    %111 = vmatprep.subr.mxu0 0.0
    %112 = vmatpush1.msra.mxu0 0.0
    %113 = vmatprep.subr.mxu0 0.0
    %114 = vmatpush1.msra.mxu0 0.0
    %115 = vmatprep.subr.mxu0 0.0
    %116 = vmatpush1.msra.mxu0 0.0
    %117 = vmatprep.subr.mxu0 0.0
    %118 = vmatpush1.msra.mxu0 0.0
    %119 = vmatprep.subr.mxu0 0.0
    %120 = vmatpush1.msra.mxu0 0.0
    %121 = vmatprep.subr.mxu0 0.0
    %122 = vmatpush1.msra.mxu0 0.0
    %123 = vmatprep.mubr.f32.mxu0 0.0
    %124 = vmatmul.mubr.f32.gmra.mrb[0].mxu0 %v42
    %v125 = vpop.f32.mrb[0].mxu0
    %v126 = vadd.f32 %v38, %v125
    %v127 = vpop.f32.mrb[0].mxu0
    %128 = vmatprep.mubr.f32.mxu0 0.0
    %129 = vmatmul.mubr.f32.gmra.mrb[0].mxu0 %v45
    %v130 = vpop.f32.mrb[0].mxu0
    %v131 = vadd.f32 %v38, %v130
    %v132 = vpop.f32.mrb[0].mxu0
    %133 = vmatprep.mubr.f32.mxu0 0.0
    %134 = vmatmul.mubr.f32.gmra.mrb[0].mxu0 %v48
    %v135 = vpop.f32.mrb[0].mxu0
    %v136 = vadd.f32 %v38, %v135
    %v137 = vpop.f32.mrb[0].mxu0
    %138 = vmatprep.mubr.f32.mxu0 0.0
    %139 = vmatmul.mubr.f32.gmra.mrb[0].mxu0 %v51
    %v140 = vpop.f32.mrb[0].mxu0
    %v141 = vadd.f32 %v38, %v140
    %v142 = vpop.f32.mrb[0].mxu0
    %143 = vmatprep.mubr.f32.mxu0 0.0
    %144 = vmatmul.mubr.f32.gmra.mrb[0].mxu0 %v54
    %v145 = vpop.f32.mrb[0].mxu0
    %v146 = vadd.f32 %v38, %v145
    %v147 = vpop.f32.mrb[0].mxu0
    %148 = vmatprep.mubr.f32.mxu0 0.0
    %149 = vmatmul.mubr.f32.gmra.mrb[0].mxu0 %v57
    %v150 = vpop.f32.mrb[0].mxu0
    %v151 = vadd.f32 %v38, %v150
    %v152 = vpop.f32.mrb[0].mxu0
    %153 = vdwg.mxu0
    %155 = vrot.lane.b32.xlu0 %v136, 96
    %v156 = vpop.permute.xlu0 %155
    %vm157 = vcmask 64512
    %v159 = vsel %vm157, %v126, 0
    %v161 = vsel %vm157, %v156, 0
    %163 = vmatprep.subr.mxu0 0.0
    %164 = vmatpush1.xpose.msra.mxu0 %v161
    %165 = vmatprep.subr.mxu0 0.0
    %166 = vmatpush1.xpose.msra.mxu0 0.0
    %167 = vmatprep.subr.mxu0 0.0
    %168 = vmatpush1.xpose.msra.mxu0 0.0
    %169 = vmatprep.subr.mxu0 0.0
    %170 = vmatpush1.xpose.msra.mxu0 0.0
    %171 = vmatprep.subr.mxu0 0.0
    %172 = vmatpush1.xpose.msra.mxu0 0.0
    %173 = vmatprep.subr.mxu0 0.0
    %174 = vmatpush1.xpose.msra.mxu0 0.0
    %175 = vmatprep.subr.mxu0 0.0
    %176 = vmatpush1.xpose.msra.mxu0 0.0
    %177 = vmatprep.subr.mxu0 0.0
    %178 = vmatpush1.xpose.msra.mxu0 0.0
    %179 = vmatprep.subr.mxu0 0.0
    %180 = vmatpush1.xpose.msra.mxu0 0.0
    %181 = vmatprep.subr.mxu0 0.0
    %182 = vmatpush1.xpose.msra.mxu0 0.0
    %183 = vmatprep.subr.mxu0 0.0
    %184 = vmatpush1.xpose.msra.mxu0 0.0
    %185 = vmatprep.subr.mxu0 0.0
    %186 = vmatpush1.xpose.msra.mxu0 0.0
    %187 = vmatprep.subr.mxu0 0.0
    %188 = vmatpush1.xpose.msra.mxu0 0.0
    %189 = vmatprep.subr.mxu0 0.0
    %190 = vmatpush1.xpose.msra.mxu0 0.0
    %191 = vmatprep.subr.mxu0 0.0
    %192 = vmatpush1.xpose.msra.mxu0 0.0
    %193 = vmatprep.subr.mxu0 0.0
    %194 = vmatpush1.xpose.msra.mxu0 0.0
    %195 = vmatprep.subr.mxu0 0.0
    %196 = vmatpush1.xpose.msra.mxu0 0.0
    %197 = vmatprep.subr.mxu0 0.0
    %198 = vmatpush1.xpose.msra.mxu0 0.0
    %199 = vmatprep.subr.mxu0 0.0
    %200 = vmatpush1.xpose.msra.mxu0 0.0
    %201 = vmatprep.subr.mxu0 0.0
    %202 = vmatpush1.xpose.msra.mxu0 0.0
    %203 = vmatprep.subr.mxu0 0.0
    %204 = vmatpush1.xpose.msra.mxu0 0.0
    %205 = vmatprep.subr.mxu0 0.0
    %206 = vmatpush1.xpose.msra.mxu0 0.0
    %207 = vmatprep.subr.mxu0 0.0
    %208 = vmatpush1.xpose.msra.mxu0 0.0
    %209 = vmatprep.subr.mxu0 0.0
    %210 = vmatpush1.xpose.msra.mxu0 0.0
    %211 = vmatprep.subr.mxu0 0.0
    %212 = vmatpush1.xpose.msra.mxu0 0.0
    %213 = vmatprep.subr.mxu0 0.0
    %214 = vmatpush1.xpose.msra.mxu0 0.0
    %215 = vmatprep.subr.mxu0 0.0
    %216 = vmatpush1.xpose.msra.mxu0 0.0
    %217 = vmatprep.subr.mxu0 0.0
    %218 = vmatpush1.xpose.msra.mxu0 0.0
    %219 = vmatprep.subr.mxu0 0.0
    %220 = vmatpush1.xpose.msra.mxu0 0.0
    %221 = vmatprep.subr.mxu0 0.0
    %222 = vmatpush1.xpose.msra.mxu0 0.0
    %223 = vmatprep.subr.mxu0 0.0
    %224 = vmatpush1.xpose.msra.mxu0 0.0
    %225 = vmatprep.subr.mxu0 0.0
    %226 = vmatpush1.xpose.msra.mxu0 0.0
    %227 = vmatprep.mubr.f32.mxu0 0.0
    %228 = vmatmul.mubr.f32.gmra.mrb[0].mxu0 %v159
    %v229 = vpop.f32.mrb[0].mxu0
    %v230 = vadd.f32 0.0, %v229
    %v231 = vpop.f32.mrb[0].mxu0
    %232 = vdwg.mxu0
    %v233 = vsel %vm157, %v230, -inf
    %234 = vmax.xlane.f32.xlu0 %v233
    %v235 = vpop.xlane.xlu0 %234
    %v236 = vsub.f32 %v230, %v235
    %v237 = vmul.f32 %v236, 1.442695
    %v238 = vpow.pop %v237
    %v239 = vsel %vm157, %v238, 0.0
    %240 = vadd.xlane.f32.xlu0 %v239
    %v241 = vpop.xlane.xlu0 %240
    %v242 = vrcp.pop %v241
    %v243 = vmul.f32 %v238, %v242
    %v244 = vadd.f32 %v243, 0.0
    %246 = vrot.lane.b32.xlu0 %v146, 64
    %v247 = vpop.permute.xlu0 %246
    %v250 = vsel %vm157, %v243, 0
    %252 = vmatprep.subr.mxu0 0.0
    %253 = vmatpush1.msra.mxu0 %v247
    %254 = vmatprep.subr.mxu0 0.0
    %255 = vmatpush1.msra.mxu0 0.0
    %256 = vmatprep.subr.mxu0 0.0
    %257 = vmatpush1.msra.mxu0 0.0
    %258 = vmatprep.subr.mxu0 0.0
    %259 = vmatpush1.msra.mxu0 0.0
    %260 = vmatprep.subr.mxu0 0.0
    %261 = vmatpush1.msra.mxu0 0.0
    %262 = vmatprep.subr.mxu0 0.0
    %263 = vmatpush1.msra.mxu0 0.0
    %264 = vmatprep.subr.mxu0 0.0
    %265 = vmatpush1.msra.mxu0 0.0
    %266 = vmatprep.subr.mxu0 0.0
    %267 = vmatpush1.msra.mxu0 0.0
    %268 = vmatprep.subr.mxu0 0.0
    %269 = vmatpush1.msra.mxu0 0.0
    %270 = vmatprep.subr.mxu0 0.0
    %271 = vmatpush1.msra.mxu0 0.0
    %272 = vmatprep.subr.mxu0 0.0
    %273 = vmatpush1.msra.mxu0 0.0
    %274 = vmatprep.subr.mxu0 0.0
    %275 = vmatpush1.msra.mxu0 0.0
    %276 = vmatprep.subr.mxu0 0.0
    %277 = vmatpush1.msra.mxu0 0.0
    %278 = vmatprep.subr.mxu0 0.0
    %279 = vmatpush1.msra.mxu0 0.0
    %280 = vmatprep.subr.mxu0 0.0
    %281 = vmatpush1.msra.mxu0 0.0
    %282 = vmatprep.subr.mxu0 0.0
    %283 = vmatpush1.msra.mxu0 0.0
    %284 = vmatprep.subr.mxu0 0.0
    %285 = vmatpush1.msra.mxu0 0.0
    %286 = vmatprep.subr.mxu0 0.0
    %287 = vmatpush1.msra.mxu0 0.0
    %288 = vmatprep.subr.mxu0 0.0
    %289 = vmatpush1.msra.mxu0 0.0
    %290 = vmatprep.subr.mxu0 0.0
    %291 = vmatpush1.msra.mxu0 0.0
    %292 = vmatprep.subr.mxu0 0.0
    %293 = vmatpush1.msra.mxu0 0.0
    %294 = vmatprep.subr.mxu0 0.0
    %295 = vmatpush1.msra.mxu0 0.0
    %296 = vmatprep.subr.mxu0 0.0
    %297 = vmatpush1.msra.mxu0 0.0
    %298 = vmatprep.subr.mxu0 0.0
    %299 = vmatpush1.msra.mxu0 0.0
    %300 = vmatprep.subr.mxu0 0.0
    %301 = vmatpush1.msra.mxu0 0.0
    %302 = vmatprep.subr.mxu0 0.0
    %303 = vmatpush1.msra.mxu0 0.0
    %304 = vmatprep.subr.mxu0 0.0
    %305 = vmatpush1.msra.mxu0 0.0
    %306 = vmatprep.subr.mxu0 0.0
    %307 = vmatpush1.msra.mxu0 0.0
    %308 = vmatprep.subr.mxu0 0.0
    %309 = vmatpush1.msra.mxu0 0.0
    %310 = vmatprep.subr.mxu0 0.0
    %311 = vmatpush1.msra.mxu0 0.0
    %312 = vmatprep.subr.mxu0 0.0
    %313 = vmatpush1.msra.mxu0 0.0
    %314 = vmatprep.subr.mxu0 0.0
    %315 = vmatpush1.msra.mxu0 0.0
    %316 = vmatprep.mubr.f32.mxu0 0.0
    %317 = vmatmul.mubr.f32.gmra.mrb[0].mxu0 %v250
    %v318 = vpop.f32.mrb[0].mxu0
    %v319 = vadd.f32 0.0, %v318
    %v320 = vpop.f32.mrb[0].mxu0
    %321 = vdwg.mxu0
    %323 = vrot.lane.b32.xlu0 %v141, 96
    %v324 = vpop.permute.xlu0 %323
    %v326 = vsel %vm157, %v131, 0
    %v328 = vsel %vm157, %v324, 0
    %330 = vmatprep.subr.mxu0 0.0
    %331 = vmatpush1.xpose.msra.mxu0 %v328
    %332 = vmatprep.subr.mxu0 0.0
    %333 = vmatpush1.xpose.msra.mxu0 0.0
    %334 = vmatprep.subr.mxu0 0.0
    %335 = vmatpush1.xpose.msra.mxu0 0.0
    %336 = vmatprep.subr.mxu0 0.0
    %337 = vmatpush1.xpose.msra.mxu0 0.0
    %338 = vmatprep.subr.mxu0 0.0
    %339 = vmatpush1.xpose.msra.mxu0 0.0
    %340 = vmatprep.subr.mxu0 0.0
    %341 = vmatpush1.xpose.msra.mxu0 0.0
    %342 = vmatprep.subr.mxu0 0.0
    %343 = vmatpush1.xpose.msra.mxu0 0.0
    %344 = vmatprep.subr.mxu0 0.0
    %345 = vmatpush1.xpose.msra.mxu0 0.0
    %346 = vmatprep.subr.mxu0 0.0
    %347 = vmatpush1.xpose.msra.mxu0 0.0
    %348 = vmatprep.subr.mxu0 0.0
    %349 = vmatpush1.xpose.msra.mxu0 0.0
    %350 = vmatprep.subr.mxu0 0.0
    %351 = vmatpush1.xpose.msra.mxu0 0.0
    %352 = vmatprep.subr.mxu0 0.0
    %353 = vmatpush1.xpose.msra.mxu0 0.0
    %354 = vmatprep.subr.mxu0 0.0
    %355 = vmatpush1.xpose.msra.mxu0 0.0
    %356 = vmatprep.subr.mxu0 0.0
    %357 = vmatpush1.xpose.msra.mxu0 0.0
    %358 = vmatprep.subr.mxu0 0.0
    %359 = vmatpush1.xpose.msra.mxu0 0.0
    %360 = vmatprep.subr.mxu0 0.0
    %361 = vmatpush1.xpose.msra.mxu0 0.0
    %362 = vmatprep.subr.mxu0 0.0
    %363 = vmatpush1.xpose.msra.mxu0 0.0
    %364 = vmatprep.subr.mxu0 0.0
    %365 = vmatpush1.xpose.msra.mxu0 0.0
    %366 = vmatprep.subr.mxu0 0.0
    %367 = vmatpush1.xpose.msra.mxu0 0.0
    %368 = vmatprep.subr.mxu0 0.0
    %369 = vmatpush1.xpose.msra.mxu0 0.0
    %370 = vmatprep.subr.mxu0 0.0
    %371 = vmatpush1.xpose.msra.mxu0 0.0
    %372 = vmatprep.subr.mxu0 0.0
    %373 = vmatpush1.xpose.msra.mxu0 0.0
    %374 = vmatprep.subr.mxu0 0.0
    %375 = vmatpush1.xpose.msra.mxu0 0.0
    %376 = vmatprep.subr.mxu0 0.0
    %377 = vmatpush1.xpose.msra.mxu0 0.0
    %378 = vmatprep.subr.mxu0 0.0
    %379 = vmatpush1.xpose.msra.mxu0 0.0
    %380 = vmatprep.subr.mxu0 0.0
    %381 = vmatpush1.xpose.msra.mxu0 0.0
    %382 = vmatprep.subr.mxu0 0.0
    %383 = vmatpush1.xpose.msra.mxu0 0.0
    %384 = vmatprep.subr.mxu0 0.0
    %385 = vmatpush1.xpose.msra.mxu0 0.0
    %386 = vmatprep.subr.mxu0 0.0
    %387 = vmatpush1.xpose.msra.mxu0 0.0
    %388 = vmatprep.subr.mxu0 0.0
    %389 = vmatpush1.xpose.msra.mxu0 0.0
    %390 = vmatprep.subr.mxu0 0.0
    %391 = vmatpush1.xpose.msra.mxu0 0.0
    %392 = vmatprep.subr.mxu0 0.0
    %393 = vmatpush1.xpose.msra.mxu0 0.0
    %394 = vmatprep.mubr.f32.mxu0 0.0
    %395 = vmatmul.mubr.f32.gmra.mrb[0].mxu0 %v326
    %v396 = vpop.f32.mrb[0].mxu0
    %v397 = vadd.f32 0.0, %v396
    %v398 = vpop.f32.mrb[0].mxu0
    %399 = vdwg.mxu0
    %v400 = vsel %vm157, %v397, -inf
    %401 = vmax.xlane.f32.xlu0 %v400
    %v402 = vpop.xlane.xlu0 %401
    %v403 = vsub.f32 %v397, %v402
    %v404 = vmul.f32 %v403, 1.442695
    %v405 = vpow.pop %v404
    %v406 = vsel %vm157, %v405, 0.0
    %407 = vadd.xlane.f32.xlu0 %v406
    %v408 = vpop.xlane.xlu0 %407
    %v409 = vrcp.pop %v408
    %v410 = vmul.f32 %v405, %v409
    %v411 = vadd.f32 %v410, 0.0
    %413 = vrot.lane.b32.xlu0 %v151, 64
    %v414 = vpop.permute.xlu0 %413
    %v417 = vsel %vm157, %v410, 0
    %419 = vmatprep.subr.mxu0 0.0
    %420 = vmatpush1.msra.mxu0 %v414
    %421 = vmatprep.subr.mxu0 0.0
    %422 = vmatpush1.msra.mxu0 0.0
    %423 = vmatprep.subr.mxu0 0.0
    %424 = vmatpush1.msra.mxu0 0.0
    %425 = vmatprep.subr.mxu0 0.0
    %426 = vmatpush1.msra.mxu0 0.0
    %427 = vmatprep.subr.mxu0 0.0
    %428 = vmatpush1.msra.mxu0 0.0
    %429 = vmatprep.subr.mxu0 0.0
    %430 = vmatpush1.msra.mxu0 0.0
    %431 = vmatprep.subr.mxu0 0.0
    %432 = vmatpush1.msra.mxu0 0.0
    %433 = vmatprep.subr.mxu0 0.0
    %434 = vmatpush1.msra.mxu0 0.0
    %435 = vmatprep.subr.mxu0 0.0
    %436 = vmatpush1.msra.mxu0 0.0
    %437 = vmatprep.subr.mxu0 0.0
    %438 = vmatpush1.msra.mxu0 0.0
    %439 = vmatprep.subr.mxu0 0.0
    %440 = vmatpush1.msra.mxu0 0.0
    %441 = vmatprep.subr.mxu0 0.0
    %442 = vmatpush1.msra.mxu0 0.0
    %443 = vmatprep.subr.mxu0 0.0
    %444 = vmatpush1.msra.mxu0 0.0
    %445 = vmatprep.subr.mxu0 0.0
    %446 = vmatpush1.msra.mxu0 0.0
    %447 = vmatprep.subr.mxu0 0.0
    %448 = vmatpush1.msra.mxu0 0.0
    %449 = vmatprep.subr.mxu0 0.0
    %450 = vmatpush1.msra.mxu0 0.0
    %451 = vmatprep.subr.mxu0 0.0
    %452 = vmatpush1.msra.mxu0 0.0
    %453 = vmatprep.subr.mxu0 0.0
    %454 = vmatpush1.msra.mxu0 0.0
    %455 = vmatprep.subr.mxu0 0.0
    %456 = vmatpush1.msra.mxu0 0.0
    %457 = vmatprep.subr.mxu0 0.0
    %458 = vmatpush1.msra.mxu0 0.0
    %459 = vmatprep.subr.mxu0 0.0
    %460 = vmatpush1.msra.mxu0 0.0
    %461 = vmatprep.subr.mxu0 0.0
    %462 = vmatpush1.msra.mxu0 0.0
    %463 = vmatprep.subr.mxu0 0.0
    %464 = vmatpush1.msra.mxu0 0.0
    %465 = vmatprep.subr.mxu0 0.0
    %466 = vmatpush1.msra.mxu0 0.0
    %467 = vmatprep.subr.mxu0 0.0
    %468 = vmatpush1.msra.mxu0 0.0
    %469 = vmatprep.subr.mxu0 0.0
    %470 = vmatpush1.msra.mxu0 0.0
    %471 = vmatprep.subr.mxu0 0.0
    %472 = vmatpush1.msra.mxu0 0.0
    %473 = vmatprep.subr.mxu0 0.0
    %474 = vmatpush1.msra.mxu0 0.0
    %475 = vmatprep.subr.mxu0 0.0
    %476 = vmatpush1.msra.mxu0 0.0
    %477 = vmatprep.subr.mxu0 0.0
    %478 = vmatpush1.msra.mxu0 0.0
    %479 = vmatprep.subr.mxu0 0.0
    %480 = vmatpush1.msra.mxu0 0.0
    %481 = vmatprep.subr.mxu0 0.0
    %482 = vmatpush1.msra.mxu0 0.0
    %483 = vmatprep.mubr.f32.mxu0 0.0
    %484 = vmatmul.mubr.f32.gmra.mrb[0].mxu0 %v417
    %v485 = vpop.f32.mrb[0].mxu0
    %v486 = vadd.f32 0.0, %v485
    %v487 = vpop.f32.mrb[0].mxu0
    %488 = vdwg.mxu0
    %489 = vrot.lane.b32.xlu0 %v126, 120
    %v490 = vpop.permute.xlu0 %489
    %491 = vrot.lane.b32.xlu0 %v136, 88
    %v492 = vpop.permute.xlu0 %491
    %v493 = vsel %vm157, %v490, 0
    %v495 = vsel %vm157, %v492, 0
    %497 = vmatprep.subr.mxu0 0.0
    %498 = vmatpush1.xpose.msra.mxu0 %v495
    %499 = vmatprep.subr.mxu0 0.0
    %500 = vmatpush1.xpose.msra.mxu0 0.0
    %501 = vmatprep.subr.mxu0 0.0
    %502 = vmatpush1.xpose.msra.mxu0 0.0
    %503 = vmatprep.subr.mxu0 0.0
    %504 = vmatpush1.xpose.msra.mxu0 0.0
    %505 = vmatprep.subr.mxu0 0.0
    %506 = vmatpush1.xpose.msra.mxu0 0.0
    %507 = vmatprep.subr.mxu0 0.0
    %508 = vmatpush1.xpose.msra.mxu0 0.0
    %509 = vmatprep.subr.mxu0 0.0
    %510 = vmatpush1.xpose.msra.mxu0 0.0
    %511 = vmatprep.subr.mxu0 0.0
    %512 = vmatpush1.xpose.msra.mxu0 0.0
    %513 = vmatprep.subr.mxu0 0.0
    %514 = vmatpush1.xpose.msra.mxu0 0.0
    %515 = vmatprep.subr.mxu0 0.0
    %516 = vmatpush1.xpose.msra.mxu0 0.0
    %517 = vmatprep.subr.mxu0 0.0
    %518 = vmatpush1.xpose.msra.mxu0 0.0
    %519 = vmatprep.subr.mxu0 0.0
    %520 = vmatpush1.xpose.msra.mxu0 0.0
    %521 = vmatprep.subr.mxu0 0.0
    %522 = vmatpush1.xpose.msra.mxu0 0.0
    %523 = vmatprep.subr.mxu0 0.0
    %524 = vmatpush1.xpose.msra.mxu0 0.0
    %525 = vmatprep.subr.mxu0 0.0
    %526 = vmatpush1.xpose.msra.mxu0 0.0
    %527 = vmatprep.subr.mxu0 0.0
    %528 = vmatpush1.xpose.msra.mxu0 0.0
    %529 = vmatprep.subr.mxu0 0.0
    %530 = vmatpush1.xpose.msra.mxu0 0.0
    %531 = vmatprep.subr.mxu0 0.0
    %532 = vmatpush1.xpose.msra.mxu0 0.0
    %533 = vmatprep.subr.mxu0 0.0
    %534 = vmatpush1.xpose.msra.mxu0 0.0
    %535 = vmatprep.subr.mxu0 0.0
    %536 = vmatpush1.xpose.msra.mxu0 0.0
    %537 = vmatprep.subr.mxu0 0.0
    %538 = vmatpush1.xpose.msra.mxu0 0.0
    %539 = vmatprep.subr.mxu0 0.0
    %540 = vmatpush1.xpose.msra.mxu0 0.0
    %541 = vmatprep.subr.mxu0 0.0
    %542 = vmatpush1.xpose.msra.mxu0 0.0
    %543 = vmatprep.subr.mxu0 0.0
    %544 = vmatpush1.xpose.msra.mxu0 0.0
    %545 = vmatprep.subr.mxu0 0.0
    %546 = vmatpush1.xpose.msra.mxu0 0.0
    %547 = vmatprep.subr.mxu0 0.0
    %548 = vmatpush1.xpose.msra.mxu0 0.0
    %549 = vmatprep.subr.mxu0 0.0
    %550 = vmatpush1.xpose.msra.mxu0 0.0
    %551 = vmatprep.subr.mxu0 0.0
    %552 = vmatpush1.xpose.msra.mxu0 0.0
    %553 = vmatprep.subr.mxu0 0.0
    %554 = vmatpush1.xpose.msra.mxu0 0.0
    %555 = vmatprep.subr.mxu0 0.0
    %556 = vmatpush1.xpose.msra.mxu0 0.0
    %557 = vmatprep.subr.mxu0 0.0
    %558 = vmatpush1.xpose.msra.mxu0 0.0
    %559 = vmatprep.subr.mxu0 0.0
    %560 = vmatpush1.xpose.msra.mxu0 0.0
    %561 = vmatprep.mubr.f32.mxu0 0.0
    %562 = vmatmul.mubr.f32.gmra.mrb[0].mxu0 %v493
    %v563 = vpop.f32.mrb[0].mxu0
    %v564 = vadd.f32 0.0, %v563
    %v565 = vpop.f32.mrb[0].mxu0
    %566 = vdwg.mxu0
    %v567 = vsel %vm157, %v564, -inf
    %568 = vmax.xlane.f32.xlu0 %v567
    %v569 = vpop.xlane.xlu0 %568
    %v570 = vsub.f32 %v564, %v569
    %v571 = vmul.f32 %v570, 1.442695
    %v572 = vpow.pop %v571
    %v573 = vsel %vm157, %v572, 0.0
    %574 = vadd.xlane.f32.xlu0 %v573
    %v575 = vpop.xlane.xlu0 %574
    %v576 = vrcp.pop %v575
    %v577 = vmul.f32 %v572, %v576
    %v578 = vadd.f32 %v244, %v577
    %579 = vrot.lane.b32.xlu0 %v146, 56
    %v580 = vpop.permute.xlu0 %579
    %v583 = vsel %vm157, %v577, 0
    %585 = vmatprep.subr.mxu0 0.0
    %586 = vmatpush1.msra.mxu0 %v580
    %587 = vmatprep.subr.mxu0 0.0
    %588 = vmatpush1.msra.mxu0 0.0
    %589 = vmatprep.subr.mxu0 0.0
    %590 = vmatpush1.msra.mxu0 0.0
    %591 = vmatprep.subr.mxu0 0.0
    %592 = vmatpush1.msra.mxu0 0.0
    %593 = vmatprep.subr.mxu0 0.0
    %594 = vmatpush1.msra.mxu0 0.0
    %595 = vmatprep.subr.mxu0 0.0
    %596 = vmatpush1.msra.mxu0 0.0
    %597 = vmatprep.subr.mxu0 0.0
    %598 = vmatpush1.msra.mxu0 0.0
    %599 = vmatprep.subr.mxu0 0.0
    %600 = vmatpush1.msra.mxu0 0.0
    %601 = vmatprep.subr.mxu0 0.0
    %602 = vmatpush1.msra.mxu0 0.0
    %603 = vmatprep.subr.mxu0 0.0
    %604 = vmatpush1.msra.mxu0 0.0
    %605 = vmatprep.subr.mxu0 0.0
    %606 = vmatpush1.msra.mxu0 0.0
    %607 = vmatprep.subr.mxu0 0.0
    %608 = vmatpush1.msra.mxu0 0.0
    %609 = vmatprep.subr.mxu0 0.0
    %610 = vmatpush1.msra.mxu0 0.0
    %611 = vmatprep.subr.mxu0 0.0
    %612 = vmatpush1.msra.mxu0 0.0
    %613 = vmatprep.subr.mxu0 0.0
    %614 = vmatpush1.msra.mxu0 0.0
    %615 = vmatprep.subr.mxu0 0.0
    %616 = vmatpush1.msra.mxu0 0.0
    %617 = vmatprep.subr.mxu0 0.0
    %618 = vmatpush1.msra.mxu0 0.0
    %619 = vmatprep.subr.mxu0 0.0
    %620 = vmatpush1.msra.mxu0 0.0
    %621 = vmatprep.subr.mxu0 0.0
    %622 = vmatpush1.msra.mxu0 0.0
    %623 = vmatprep.subr.mxu0 0.0
    %624 = vmatpush1.msra.mxu0 0.0
    %625 = vmatprep.subr.mxu0 0.0
    %626 = vmatpush1.msra.mxu0 0.0
    %627 = vmatprep.subr.mxu0 0.0
    %628 = vmatpush1.msra.mxu0 0.0
    %629 = vmatprep.subr.mxu0 0.0
    %630 = vmatpush1.msra.mxu0 0.0
    %631 = vmatprep.subr.mxu0 0.0
    %632 = vmatpush1.msra.mxu0 0.0
    %633 = vmatprep.subr.mxu0 0.0
    %634 = vmatpush1.msra.mxu0 0.0
    %635 = vmatprep.subr.mxu0 0.0
    %636 = vmatpush1.msra.mxu0 0.0
    %637 = vmatprep.subr.mxu0 0.0
    %638 = vmatpush1.msra.mxu0 0.0
    %639 = vmatprep.subr.mxu0 0.0
    %640 = vmatpush1.msra.mxu0 0.0
    %641 = vmatprep.subr.mxu0 0.0
    %642 = vmatpush1.msra.mxu0 0.0
    %643 = vmatprep.subr.mxu0 0.0
    %644 = vmatpush1.msra.mxu0 0.0
    %645 = vmatprep.subr.mxu0 0.0
    %646 = vmatpush1.msra.mxu0 0.0
    %647 = vmatprep.subr.mxu0 0.0
    %648 = vmatpush1.msra.mxu0 0.0
    %649 = vmatprep.mubr.f32.mxu0 0.0
    %650 = vmatmul.mubr.f32.gmra.mrb[0].mxu0 %v583
    %v651 = vpop.f32.mrb[0].mxu0
    %v652 = vadd.f32 0.0, %v651
    %v653 = vpop.f32.mrb[0].mxu0
    %654 = vdwg.mxu0
    %655 = vrot.lane.b32.xlu0 %v131, 120
    %v656 = vpop.permute.xlu0 %655
    %657 = vrot.lane.b32.xlu0 %v141, 88
    %v658 = vpop.permute.xlu0 %657
    %v659 = vsel %vm157, %v656, 0
    %v661 = vsel %vm157, %v658, 0
    %663 = vmatprep.subr.mxu0 0.0
    %664 = vmatpush1.xpose.msra.mxu0 %v661
    %665 = vmatprep.subr.mxu0 0.0
    %666 = vmatpush1.xpose.msra.mxu0 0.0
    %667 = vmatprep.subr.mxu0 0.0
    %668 = vmatpush1.xpose.msra.mxu0 0.0
    %669 = vmatprep.subr.mxu0 0.0
    %670 = vmatpush1.xpose.msra.mxu0 0.0
    %671 = vmatprep.subr.mxu0 0.0
    %672 = vmatpush1.xpose.msra.mxu0 0.0
    %673 = vmatprep.subr.mxu0 0.0
    %674 = vmatpush1.xpose.msra.mxu0 0.0
    %675 = vmatprep.subr.mxu0 0.0
    %676 = vmatpush1.xpose.msra.mxu0 0.0
    %677 = vmatprep.subr.mxu0 0.0
    %678 = vmatpush1.xpose.msra.mxu0 0.0
    %679 = vmatprep.subr.mxu0 0.0
    %680 = vmatpush1.xpose.msra.mxu0 0.0
    %681 = vmatprep.subr.mxu0 0.0
    %682 = vmatpush1.xpose.msra.mxu0 0.0
    %683 = vmatprep.subr.mxu0 0.0
    %684 = vmatpush1.xpose.msra.mxu0 0.0
    %685 = vmatprep.subr.mxu0 0.0
    %686 = vmatpush1.xpose.msra.mxu0 0.0
    %687 = vmatprep.subr.mxu0 0.0
    %688 = vmatpush1.xpose.msra.mxu0 0.0
    %689 = vmatprep.subr.mxu0 0.0
    %690 = vmatpush1.xpose.msra.mxu0 0.0
    %691 = vmatprep.subr.mxu0 0.0
    %692 = vmatpush1.xpose.msra.mxu0 0.0
    %693 = vmatprep.subr.mxu0 0.0
    %694 = vmatpush1.xpose.msra.mxu0 0.0
    %695 = vmatprep.subr.mxu0 0.0
    %696 = vmatpush1.xpose.msra.mxu0 0.0
    %697 = vmatprep.subr.mxu0 0.0
    %698 = vmatpush1.xpose.msra.mxu0 0.0
    %699 = vmatprep.subr.mxu0 0.0
    %700 = vmatpush1.xpose.msra.mxu0 0.0
    %701 = vmatprep.subr.mxu0 0.0
    %702 = vmatpush1.xpose.msra.mxu0 0.0
    %703 = vmatprep.subr.mxu0 0.0
    %704 = vmatpush1.xpose.msra.mxu0 0.0
    %705 = vmatprep.subr.mxu0 0.0
    %706 = vmatpush1.xpose.msra.mxu0 0.0
    %707 = vmatprep.subr.mxu0 0.0
    %708 = vmatpush1.xpose.msra.mxu0 0.0
    %709 = vmatprep.subr.mxu0 0.0
    %710 = vmatpush1.xpose.msra.mxu0 0.0
    %711 = vmatprep.subr.mxu0 0.0
    %712 = vmatpush1.xpose.msra.mxu0 0.0
    %713 = vmatprep.subr.mxu0 0.0
    %714 = vmatpush1.xpose.msra.mxu0 0.0
    %715 = vmatprep.subr.mxu0 0.0
    %716 = vmatpush1.xpose.msra.mxu0 0.0
    %717 = vmatprep.subr.mxu0 0.0
    %718 = vmatpush1.xpose.msra.mxu0 0.0
    %719 = vmatprep.subr.mxu0 0.0
    %720 = vmatpush1.xpose.msra.mxu0 0.0
    %721 = vmatprep.subr.mxu0 0.0
    %722 = vmatpush1.xpose.msra.mxu0 0.0
    %723 = vmatprep.subr.mxu0 0.0
    %724 = vmatpush1.xpose.msra.mxu0 0.0
    %725 = vmatprep.subr.mxu0 0.0
    %726 = vmatpush1.xpose.msra.mxu0 0.0
    %727 = vmatprep.mubr.f32.mxu0 0.0
    %728 = vmatmul.mubr.f32.gmra.mrb[0].mxu0 %v659
    %v729 = vpop.f32.mrb[0].mxu0
    %v730 = vadd.f32 0.0, %v729
    %v731 = vpop.f32.mrb[0].mxu0
    %732 = vdwg.mxu0
    %v733 = vsel %vm157, %v730, -inf
    %734 = vmax.xlane.f32.xlu0 %v733
    %v735 = vpop.xlane.xlu0 %734
    %v736 = vsub.f32 %v730, %v735
    %v737 = vmul.f32 %v736, 1.442695
    %v738 = vpow.pop %v737
    %v739 = vsel %vm157, %v738, 0.0
    %740 = vadd.xlane.f32.xlu0 %v739
    %v741 = vpop.xlane.xlu0 %740
    %v742 = vrcp.pop %v741
    %v743 = vmul.f32 %v738, %v742
    %v744 = vadd.f32 %v411, %v743
    %745 = vrot.lane.b32.xlu0 %v151, 56
    %v746 = vpop.permute.xlu0 %745
    %v749 = vsel %vm157, %v743, 0
    %751 = vmatprep.subr.mxu0 0.0
    %752 = vmatpush1.msra.mxu0 %v746
    %753 = vmatprep.subr.mxu0 0.0
    %754 = vmatpush1.msra.mxu0 0.0
    %755 = vmatprep.subr.mxu0 0.0
    %756 = vmatpush1.msra.mxu0 0.0
    %757 = vmatprep.subr.mxu0 0.0
    %758 = vmatpush1.msra.mxu0 0.0
    %759 = vmatprep.subr.mxu0 0.0
    %760 = vmatpush1.msra.mxu0 0.0
    %761 = vmatprep.subr.mxu0 0.0
    %762 = vmatpush1.msra.mxu0 0.0
    %763 = vmatprep.subr.mxu0 0.0
    %764 = vmatpush1.msra.mxu0 0.0
    %765 = vmatprep.subr.mxu0 0.0
    %766 = vmatpush1.msra.mxu0 0.0
    %767 = vmatprep.subr.mxu0 0.0
    %768 = vmatpush1.msra.mxu0 0.0
    %769 = vmatprep.subr.mxu0 0.0
    %770 = vmatpush1.msra.mxu0 0.0
    %771 = vmatprep.subr.mxu0 0.0
    %772 = vmatpush1.msra.mxu0 0.0
    %773 = vmatprep.subr.mxu0 0.0
    %774 = vmatpush1.msra.mxu0 0.0
    %775 = vmatprep.subr.mxu0 0.0
    %776 = vmatpush1.msra.mxu0 0.0
    %777 = vmatprep.subr.mxu0 0.0
    %778 = vmatpush1.msra.mxu0 0.0
    %779 = vmatprep.subr.mxu0 0.0
    %780 = vmatpush1.msra.mxu0 0.0
    %781 = vmatprep.subr.mxu0 0.0
    %782 = vmatpush1.msra.mxu0 0.0
    %783 = vmatprep.subr.mxu0 0.0
    %784 = vmatpush1.msra.mxu0 0.0
    %785 = vmatprep.subr.mxu0 0.0
    %786 = vmatpush1.msra.mxu0 0.0
    %787 = vmatprep.subr.mxu0 0.0
    %788 = vmatpush1.msra.mxu0 0.0
    %789 = vmatprep.subr.mxu0 0.0
    %790 = vmatpush1.msra.mxu0 0.0
    %791 = vmatprep.subr.mxu0 0.0
    %792 = vmatpush1.msra.mxu0 0.0
    %793 = vmatprep.subr.mxu0 0.0
    %794 = vmatpush1.msra.mxu0 0.0
    %795 = vmatprep.subr.mxu0 0.0
    %796 = vmatpush1.msra.mxu0 0.0
    %797 = vmatprep.subr.mxu0 0.0
    %798 = vmatpush1.msra.mxu0 0.0
    %799 = vmatprep.subr.mxu0 0.0
    %800 = vmatpush1.msra.mxu0 0.0
    %801 = vmatprep.subr.mxu0 0.0
    %802 = vmatpush1.msra.mxu0 0.0
    %803 = vmatprep.subr.mxu0 0.0
    %804 = vmatpush1.msra.mxu0 0.0
    %805 = vmatprep.subr.mxu0 0.0
    %806 = vmatpush1.msra.mxu0 0.0
    %807 = vmatprep.subr.mxu0 0.0
    %808 = vmatpush1.msra.mxu0 0.0
    %809 = vmatprep.subr.mxu0 0.0
    %810 = vmatpush1.msra.mxu0 0.0
    %811 = vmatprep.subr.mxu0 0.0
    %812 = vmatpush1.msra.mxu0 0.0
    %813 = vmatprep.subr.mxu0 0.0
    %814 = vmatpush1.msra.mxu0 0.0
    %815 = vmatprep.mubr.f32.mxu0 0.0
    %816 = vmatmul.mubr.f32.gmra.mrb[0].mxu0 %v749
    %v817 = vpop.f32.mrb[0].mxu0
    %v818 = vadd.f32 0.0, %v817
    %v819 = vpop.f32.mrb[0].mxu0
    %820 = vdwg.mxu0
    %821 = vrot.lane.b32.xlu0 %v126, 112
    %v822 = vpop.permute.xlu0 %821
    %823 = vrot.lane.b32.xlu0 %v136, 80
    %v824 = vpop.permute.xlu0 %823
    %v825 = vsel %vm157, %v822, 0
    %v827 = vsel %vm157, %v824, 0
    %829 = vmatprep.subr.mxu0 0.0
    %830 = vmatpush1.xpose.msra.mxu0 %v827
    %831 = vmatprep.subr.mxu0 0.0
    %832 = vmatpush1.xpose.msra.mxu0 0.0
    %833 = vmatprep.subr.mxu0 0.0
    %834 = vmatpush1.xpose.msra.mxu0 0.0
    %835 = vmatprep.subr.mxu0 0.0
    %836 = vmatpush1.xpose.msra.mxu0 0.0
    %837 = vmatprep.subr.mxu0 0.0
    %838 = vmatpush1.xpose.msra.mxu0 0.0
    %839 = vmatprep.subr.mxu0 0.0
    %840 = vmatpush1.xpose.msra.mxu0 0.0
    %841 = vmatprep.subr.mxu0 0.0
    %842 = vmatpush1.xpose.msra.mxu0 0.0
    %843 = vmatprep.subr.mxu0 0.0
    %844 = vmatpush1.xpose.msra.mxu0 0.0
    %845 = vmatprep.subr.mxu0 0.0
    %846 = vmatpush1.xpose.msra.mxu0 0.0
    %847 = vmatprep.subr.mxu0 0.0
    %848 = vmatpush1.xpose.msra.mxu0 0.0
    %849 = vmatprep.subr.mxu0 0.0
    %850 = vmatpush1.xpose.msra.mxu0 0.0
    %851 = vmatprep.subr.mxu0 0.0
    %852 = vmatpush1.xpose.msra.mxu0 0.0
    %853 = vmatprep.subr.mxu0 0.0
    %854 = vmatpush1.xpose.msra.mxu0 0.0
    %855 = vmatprep.subr.mxu0 0.0
    %856 = vmatpush1.xpose.msra.mxu0 0.0
    %857 = vmatprep.subr.mxu0 0.0
    %858 = vmatpush1.xpose.msra.mxu0 0.0
    %859 = vmatprep.subr.mxu0 0.0
    %860 = vmatpush1.xpose.msra.mxu0 0.0
    %861 = vmatprep.subr.mxu0 0.0
    %862 = vmatpush1.xpose.msra.mxu0 0.0
    %863 = vmatprep.subr.mxu0 0.0
    %864 = vmatpush1.xpose.msra.mxu0 0.0
    %865 = vmatprep.subr.mxu0 0.0
    %866 = vmatpush1.xpose.msra.mxu0 0.0
    %867 = vmatprep.subr.mxu0 0.0
    %868 = vmatpush1.xpose.msra.mxu0 0.0
    %869 = vmatprep.subr.mxu0 0.0
    %870 = vmatpush1.xpose.msra.mxu0 0.0
    %871 = vmatprep.subr.mxu0 0.0
    %872 = vmatpush1.xpose.msra.mxu0 0.0
    %873 = vmatprep.subr.mxu0 0.0
    %874 = vmatpush1.xpose.msra.mxu0 0.0
    %875 = vmatprep.subr.mxu0 0.0
    %876 = vmatpush1.xpose.msra.mxu0 0.0
    %877 = vmatprep.subr.mxu0 0.0
    %878 = vmatpush1.xpose.msra.mxu0 0.0
    %879 = vmatprep.subr.mxu0 0.0
    %880 = vmatpush1.xpose.msra.mxu0 0.0
    %881 = vmatprep.subr.mxu0 0.0
    %882 = vmatpush1.xpose.msra.mxu0 0.0
    %883 = vmatprep.subr.mxu0 0.0
    %884 = vmatpush1.xpose.msra.mxu0 0.0
    %885 = vmatprep.subr.mxu0 0.0
    %886 = vmatpush1.xpose.msra.mxu0 0.0
    %887 = vmatprep.subr.mxu0 0.0
    %888 = vmatpush1.xpose.msra.mxu0 0.0
    %889 = vmatprep.subr.mxu0 0.0
    %890 = vmatpush1.xpose.msra.mxu0 0.0
    %891 = vmatprep.subr.mxu0 0.0
    %892 = vmatpush1.xpose.msra.mxu0 0.0
    %893 = vmatprep.mubr.f32.mxu0 0.0
    %894 = vmatmul.mubr.f32.gmra.mrb[0].mxu0 %v825
    %v895 = vpop.f32.mrb[0].mxu0
    %v896 = vadd.f32 0.0, %v895
    %v897 = vpop.f32.mrb[0].mxu0
    %898 = vdwg.mxu0
    %v899 = vsel %vm157, %v896, -inf
    %900 = vmax.xlane.f32.xlu0 %v899
    %v901 = vpop.xlane.xlu0 %900
    %v902 = vsub.f32 %v896, %v901
    %v903 = vmul.f32 %v902, 1.442695
    %v904 = vpow.pop %v903
    %v905 = vsel %vm157, %v904, 0.0
    %906 = vadd.xlane.f32.xlu0 %v905
    %v907 = vpop.xlane.xlu0 %906
    %v908 = vrcp.pop %v907
    %v909 = vmul.f32 %v904, %v908
    %v910 = vadd.f32 %v578, %v909
    %911 = vrot.lane.b32.xlu0 %v146, 48
    %v912 = vpop.permute.xlu0 %911
    %v915 = vsel %vm157, %v909, 0
    %917 = vmatprep.subr.mxu0 0.0
    %918 = vmatpush1.msra.mxu0 %v912
    %919 = vmatprep.subr.mxu0 0.0
    %920 = vmatpush1.msra.mxu0 0.0
    %921 = vmatprep.subr.mxu0 0.0
    %922 = vmatpush1.msra.mxu0 0.0
    %923 = vmatprep.subr.mxu0 0.0
    %924 = vmatpush1.msra.mxu0 0.0
    %925 = vmatprep.subr.mxu0 0.0
    %926 = vmatpush1.msra.mxu0 0.0
    %927 = vmatprep.subr.mxu0 0.0
    %928 = vmatpush1.msra.mxu0 0.0
    %929 = vmatprep.subr.mxu0 0.0
    %930 = vmatpush1.msra.mxu0 0.0
    %931 = vmatprep.subr.mxu0 0.0
    %932 = vmatpush1.msra.mxu0 0.0
    %933 = vmatprep.subr.mxu0 0.0
    %934 = vmatpush1.msra.mxu0 0.0
    %935 = vmatprep.subr.mxu0 0.0
    %936 = vmatpush1.msra.mxu0 0.0
    %937 = vmatprep.subr.mxu0 0.0
    %938 = vmatpush1.msra.mxu0 0.0
    %939 = vmatprep.subr.mxu0 0.0
    %940 = vmatpush1.msra.mxu0 0.0
    %941 = vmatprep.subr.mxu0 0.0
    %942 = vmatpush1.msra.mxu0 0.0
    %943 = vmatprep.subr.mxu0 0.0
    %944 = vmatpush1.msra.mxu0 0.0
    %945 = vmatprep.subr.mxu0 0.0
    %946 = vmatpush1.msra.mxu0 0.0
    %947 = vmatprep.subr.mxu0 0.0
    %948 = vmatpush1.msra.mxu0 0.0
    %949 = vmatprep.subr.mxu0 0.0
    %950 = vmatpush1.msra.mxu0 0.0
    %951 = vmatprep.subr.mxu0 0.0
    %952 = vmatpush1.msra.mxu0 0.0
    %953 = vmatprep.subr.mxu0 0.0
    %954 = vmatpush1.msra.mxu0 0.0
    %955 = vmatprep.subr.mxu0 0.0
    %956 = vmatpush1.msra.mxu0 0.0
    %957 = vmatprep.subr.mxu0 0.0
    %958 = vmatpush1.msra.mxu0 0.0
    %959 = vmatprep.subr.mxu0 0.0
    %960 = vmatpush1.msra.mxu0 0.0
    %961 = vmatprep.subr.mxu0 0.0
    %962 = vmatpush1.msra.mxu0 0.0
    %963 = vmatprep.subr.mxu0 0.0
    %964 = vmatpush1.msra.mxu0 0.0
    %965 = vmatprep.subr.mxu0 0.0
    %966 = vmatpush1.msra.mxu0 0.0
    %967 = vmatprep.subr.mxu0 0.0
    %968 = vmatpush1.msra.mxu0 0.0
    %969 = vmatprep.subr.mxu0 0.0
    %970 = vmatpush1.msra.mxu0 0.0
    %971 = vmatprep.subr.mxu0 0.0
    %972 = vmatpush1.msra.mxu0 0.0
    %973 = vmatprep.subr.mxu0 0.0
    %974 = vmatpush1.msra.mxu0 0.0
    %975 = vmatprep.subr.mxu0 0.0
    %976 = vmatpush1.msra.mxu0 0.0
    %977 = vmatprep.subr.mxu0 0.0
    %978 = vmatpush1.msra.mxu0 0.0
    %979 = vmatprep.subr.mxu0 0.0
    %980 = vmatpush1.msra.mxu0 0.0
    %981 = vmatprep.mubr.f32.mxu0 0.0
    %982 = vmatmul.mubr.f32.gmra.mrb[0].mxu0 %v915
    %v983 = vpop.f32.mrb[0].mxu0
    %v984 = vadd.f32 0.0, %v983
    %v985 = vpop.f32.mrb[0].mxu0
    %986 = vdwg.mxu0
    %987 = vrot.lane.b32.xlu0 %v131, 112
    %v988 = vpop.permute.xlu0 %987
    %989 = vrot.lane.b32.xlu0 %v141, 80
    %v990 = vpop.permute.xlu0 %989
    %v991 = vsel %vm157, %v988, 0
    %v993 = vsel %vm157, %v990, 0
    %995 = vmatprep.subr.mxu0 0.0
    %996 = vmatpush1.xpose.msra.mxu0 %v993
    %997 = vmatprep.subr.mxu0 0.0
    %998 = vmatpush1.xpose.msra.mxu0 0.0
    %999 = vmatprep.subr.mxu0 0.0
    %1000 = vmatpush1.xpose.msra.mxu0 0.0
    %1001 = vmatprep.subr.mxu0 0.0
    %1002 = vmatpush1.xpose.msra.mxu0 0.0
    %1003 = vmatprep.subr.mxu0 0.0
    %1004 = vmatpush1.xpose.msra.mxu0 0.0
    %1005 = vmatprep.subr.mxu0 0.0
    %1006 = vmatpush1.xpose.msra.mxu0 0.0
    %1007 = vmatprep.subr.mxu0 0.0
    %1008 = vmatpush1.xpose.msra.mxu0 0.0
    %1009 = vmatprep.subr.mxu0 0.0
    %1010 = vmatpush1.xpose.msra.mxu0 0.0
    %1011 = vmatprep.subr.mxu0 0.0
    %1012 = vmatpush1.xpose.msra.mxu0 0.0
    %1013 = vmatprep.subr.mxu0 0.0
    %1014 = vmatpush1.xpose.msra.mxu0 0.0
    %1015 = vmatprep.subr.mxu0 0.0
    %1016 = vmatpush1.xpose.msra.mxu0 0.0
    %1017 = vmatprep.subr.mxu0 0.0
    %1018 = vmatpush1.xpose.msra.mxu0 0.0
    %1019 = vmatprep.subr.mxu0 0.0
    %1020 = vmatpush1.xpose.msra.mxu0 0.0
    %1021 = vmatprep.subr.mxu0 0.0
    %1022 = vmatpush1.xpose.msra.mxu0 0.0
    %1023 = vmatprep.subr.mxu0 0.0
    %1024 = vmatpush1.xpose.msra.mxu0 0.0
    %1025 = vmatprep.subr.mxu0 0.0
    %1026 = vmatpush1.xpose.msra.mxu0 0.0
    %1027 = vmatprep.subr.mxu0 0.0
    %1028 = vmatpush1.xpose.msra.mxu0 0.0
    %1029 = vmatprep.subr.mxu0 0.0
    %1030 = vmatpush1.xpose.msra.mxu0 0.0
    %1031 = vmatprep.subr.mxu0 0.0
    %1032 = vmatpush1.xpose.msra.mxu0 0.0
    %1033 = vmatprep.subr.mxu0 0.0
    %1034 = vmatpush1.xpose.msra.mxu0 0.0
    %1035 = vmatprep.subr.mxu0 0.0
    %1036 = vmatpush1.xpose.msra.mxu0 0.0
    %1037 = vmatprep.subr.mxu0 0.0
    %1038 = vmatpush1.xpose.msra.mxu0 0.0
    %1039 = vmatprep.subr.mxu0 0.0
    %1040 = vmatpush1.xpose.msra.mxu0 0.0
    %1041 = vmatprep.subr.mxu0 0.0
    %1042 = vmatpush1.xpose.msra.mxu0 0.0
    %1043 = vmatprep.subr.mxu0 0.0
    %1044 = vmatpush1.xpose.msra.mxu0 0.0
    %1045 = vmatprep.subr.mxu0 0.0
    %1046 = vmatpush1.xpose.msra.mxu0 0.0
    %1047 = vmatprep.subr.mxu0 0.0
    %1048 = vmatpush1.xpose.msra.mxu0 0.0
    %1049 = vmatprep.subr.mxu0 0.0
    %1050 = vmatpush1.xpose.msra.mxu0 0.0
    %1051 = vmatprep.subr.mxu0 0.0
    %1052 = vmatpush1.xpose.msra.mxu0 0.0
    %1053 = vmatprep.subr.mxu0 0.0
    %1054 = vmatpush1.xpose.msra.mxu0 0.0
    %1055 = vmatprep.subr.mxu0 0.0
    %1056 = vmatpush1.xpose.msra.mxu0 0.0
    %1057 = vmatprep.subr.mxu0 0.0
    %1058 = vmatpush1.xpose.msra.mxu0 0.0
    %1059 = vmatprep.mubr.f32.mxu0 0.0
    %1060 = vmatmul.mubr.f32.gmra.mrb[0].mxu0 %v991
    %v1061 = vpop.f32.mrb[0].mxu0
    %v1062 = vadd.f32 0.0, %v1061
    %v1063 = vpop.f32.mrb[0].mxu0
    %1064 = vdwg.mxu0
    %v1065 = vsel %vm157, %v1062, -inf
    %1066 = vmax.xlane.f32.xlu0 %v1065
    %v1067 = vpop.xlane.xlu0 %1066
    %v1068 = vsub.f32 %v1062, %v1067
    %v1069 = vmul.f32 %v1068, 1.442695
    %v1070 = vpow.pop %v1069
    %v1071 = vsel %vm157, %v1070, 0.0
    %1072 = vadd.xlane.f32.xlu0 %v1071
    %v1073 = vpop.xlane.xlu0 %1072
    %v1074 = vrcp.pop %v1073
    %v1075 = vmul.f32 %v1070, %v1074
    %v1076 = vadd.f32 %v744, %v1075
    %1077 = vrot.lane.b32.xlu0 %v151, 48
    %v1078 = vpop.permute.xlu0 %1077
    %v1081 = vsel %vm157, %v1075, 0
    %1083 = vmatprep.subr.mxu0 0.0
    %1084 = vmatpush1.msra.mxu0 %v1078
    %1085 = vmatprep.subr.mxu0 0.0
    %1086 = vmatpush1.msra.mxu0 0.0
    %1087 = vmatprep.subr.mxu0 0.0
    %1088 = vmatpush1.msra.mxu0 0.0
    %1089 = vmatprep.subr.mxu0 0.0
    %1090 = vmatpush1.msra.mxu0 0.0
    %1091 = vmatprep.subr.mxu0 0.0
    %1092 = vmatpush1.msra.mxu0 0.0
    %1093 = vmatprep.subr.mxu0 0.0
    %1094 = vmatpush1.msra.mxu0 0.0
    %1095 = vmatprep.subr.mxu0 0.0
    %1096 = vmatpush1.msra.mxu0 0.0
    %1097 = vmatprep.subr.mxu0 0.0
    %1098 = vmatpush1.msra.mxu0 0.0
    %1099 = vmatprep.subr.mxu0 0.0
    %1100 = vmatpush1.msra.mxu0 0.0
    %1101 = vmatprep.subr.mxu0 0.0
    %1102 = vmatpush1.msra.mxu0 0.0
    %1103 = vmatprep.subr.mxu0 0.0
    %1104 = vmatpush1.msra.mxu0 0.0
    %1105 = vmatprep.subr.mxu0 0.0
    %1106 = vmatpush1.msra.mxu0 0.0
    %1107 = vmatprep.subr.mxu0 0.0
    %1108 = vmatpush1.msra.mxu0 0.0
    %1109 = vmatprep.subr.mxu0 0.0
    %1110 = vmatpush1.msra.mxu0 0.0
    %1111 = vmatprep.subr.mxu0 0.0
    %1112 = vmatpush1.msra.mxu0 0.0
    %1113 = vmatprep.subr.mxu0 0.0
    %1114 = vmatpush1.msra.mxu0 0.0
    %1115 = vmatprep.subr.mxu0 0.0
    %1116 = vmatpush1.msra.mxu0 0.0
    %1117 = vmatprep.subr.mxu0 0.0
    %1118 = vmatpush1.msra.mxu0 0.0
    %1119 = vmatprep.subr.mxu0 0.0
    %1120 = vmatpush1.msra.mxu0 0.0
    %1121 = vmatprep.subr.mxu0 0.0
    %1122 = vmatpush1.msra.mxu0 0.0
    %1123 = vmatprep.subr.mxu0 0.0
    %1124 = vmatpush1.msra.mxu0 0.0
    %1125 = vmatprep.subr.mxu0 0.0
    %1126 = vmatpush1.msra.mxu0 0.0
    %1127 = vmatprep.subr.mxu0 0.0
    %1128 = vmatpush1.msra.mxu0 0.0
    %1129 = vmatprep.subr.mxu0 0.0
    %1130 = vmatpush1.msra.mxu0 0.0
    %1131 = vmatprep.subr.mxu0 0.0
    %1132 = vmatpush1.msra.mxu0 0.0
    %1133 = vmatprep.subr.mxu0 0.0
    %1134 = vmatpush1.msra.mxu0 0.0
    %1135 = vmatprep.subr.mxu0 0.0
    %1136 = vmatpush1.msra.mxu0 0.0
    %1137 = vmatprep.subr.mxu0 0.0
    %1138 = vmatpush1.msra.mxu0 0.0
    %1139 = vmatprep.subr.mxu0 0.0
    %1140 = vmatpush1.msra.mxu0 0.0
    %1141 = vmatprep.subr.mxu0 0.0
    %1142 = vmatpush1.msra.mxu0 0.0
    %1143 = vmatprep.subr.mxu0 0.0
    %1144 = vmatpush1.msra.mxu0 0.0
    %1145 = vmatprep.subr.mxu0 0.0
    %1146 = vmatpush1.msra.mxu0 0.0
    %1147 = vmatprep.mubr.f32.mxu0 0.0
    %1148 = vmatmul.mubr.f32.gmra.mrb[0].mxu0 %v1081
    %v1149 = vpop.f32.mrb[0].mxu0
    %v1150 = vadd.f32 0.0, %v1149
    %v1151 = vpop.f32.mrb[0].mxu0
    %1152 = vdwg.mxu0
    %1153 = vrot.lane.b32.xlu0 %v126, 104
    %v1154 = vpop.permute.xlu0 %1153
    %1155 = vrot.lane.b32.xlu0 %v136, 72
    %v1156 = vpop.permute.xlu0 %1155
    %v1157 = vsel %vm157, %v1154, 0
    %v1159 = vsel %vm157, %v1156, 0
    %1161 = vmatprep.subr.mxu0 0.0
    %1162 = vmatpush1.xpose.msra.mxu0 %v1159
    %1163 = vmatprep.subr.mxu0 0.0
    %1164 = vmatpush1.xpose.msra.mxu0 0.0
    %1165 = vmatprep.subr.mxu0 0.0
    %1166 = vmatpush1.xpose.msra.mxu0 0.0
    %1167 = vmatprep.subr.mxu0 0.0
    %1168 = vmatpush1.xpose.msra.mxu0 0.0
    %1169 = vmatprep.subr.mxu0 0.0
    %1170 = vmatpush1.xpose.msra.mxu0 0.0
    %1171 = vmatprep.subr.mxu0 0.0
    %1172 = vmatpush1.xpose.msra.mxu0 0.0
    %1173 = vmatprep.subr.mxu0 0.0
    %1174 = vmatpush1.xpose.msra.mxu0 0.0
    %1175 = vmatprep.subr.mxu0 0.0
    %1176 = vmatpush1.xpose.msra.mxu0 0.0
    %1177 = vmatprep.subr.mxu0 0.0
    %1178 = vmatpush1.xpose.msra.mxu0 0.0
    %1179 = vmatprep.subr.mxu0 0.0
    %1180 = vmatpush1.xpose.msra.mxu0 0.0
    %1181 = vmatprep.subr.mxu0 0.0
    %1182 = vmatpush1.xpose.msra.mxu0 0.0
    %1183 = vmatprep.subr.mxu0 0.0
    %1184 = vmatpush1.xpose.msra.mxu0 0.0
    %1185 = vmatprep.subr.mxu0 0.0
    %1186 = vmatpush1.xpose.msra.mxu0 0.0
    %1187 = vmatprep.subr.mxu0 0.0
    %1188 = vmatpush1.xpose.msra.mxu0 0.0
    %1189 = vmatprep.subr.mxu0 0.0
    %1190 = vmatpush1.xpose.msra.mxu0 0.0
    %1191 = vmatprep.subr.mxu0 0.0
    %1192 = vmatpush1.xpose.msra.mxu0 0.0
    %1193 = vmatprep.subr.mxu0 0.0
    %1194 = vmatpush1.xpose.msra.mxu0 0.0
    %1195 = vmatprep.subr.mxu0 0.0
    %1196 = vmatpush1.xpose.msra.mxu0 0.0
    %1197 = vmatprep.subr.mxu0 0.0
    %1198 = vmatpush1.xpose.msra.mxu0 0.0
    %1199 = vmatprep.subr.mxu0 0.0
    %1200 = vmatpush1.xpose.msra.mxu0 0.0
    %1201 = vmatprep.subr.mxu0 0.0
    %1202 = vmatpush1.xpose.msra.mxu0 0.0
    %1203 = vmatprep.subr.mxu0 0.0
    %1204 = vmatpush1.xpose.msra.mxu0 0.0
    %1205 = vmatprep.subr.mxu0 0.0
    %1206 = vmatpush1.xpose.msra.mxu0 0.0
    %1207 = vmatprep.subr.mxu0 0.0
    %1208 = vmatpush1.xpose.msra.mxu0 0.0
    %1209 = vmatprep.subr.mxu0 0.0
    %1210 = vmatpush1.xpose.msra.mxu0 0.0
    %1211 = vmatprep.subr.mxu0 0.0
    %1212 = vmatpush1.xpose.msra.mxu0 0.0
    %1213 = vmatprep.subr.mxu0 0.0
    %1214 = vmatpush1.xpose.msra.mxu0 0.0
    %1215 = vmatprep.subr.mxu0 0.0
    %1216 = vmatpush1.xpose.msra.mxu0 0.0
    %1217 = vmatprep.subr.mxu0 0.0
    %1218 = vmatpush1.xpose.msra.mxu0 0.0
    %1219 = vmatprep.subr.mxu0 0.0
    %1220 = vmatpush1.xpose.msra.mxu0 0.0
    %1221 = vmatprep.subr.mxu0 0.0
    %1222 = vmatpush1.xpose.msra.mxu0 0.0
    %1223 = vmatprep.subr.mxu0 0.0
    %1224 = vmatpush1.xpose.msra.mxu0 0.0
    %1225 = vmatprep.mubr.f32.mxu0 0.0
    %1226 = vmatmul.mubr.f32.gmra.mrb[0].mxu0 %v1157
    %v1227 = vpop.f32.mrb[0].mxu0
    %v1228 = vadd.f32 0.0, %v1227
    %v1229 = vpop.f32.mrb[0].mxu0
    %1230 = vdwg.mxu0
    %v1231 = vsel %vm157, %v1228, -inf
    %1232 = vmax.xlane.f32.xlu0 %v1231
    %v1233 = vpop.xlane.xlu0 %1232
    %v1234 = vsub.f32 %v1228, %v1233
    %v1235 = vmul.f32 %v1234, 1.442695
    %v1236 = vpow.pop %v1235
    %v1237 = vsel %vm157, %v1236, 0.0
    %1238 = vadd.xlane.f32.xlu0 %v1237
    %v1239 = vpop.xlane.xlu0 %1238
    %v1240 = vrcp.pop %v1239
    %v1241 = vmul.f32 %v1236, %v1240
    %v1242 = vadd.f32 %v910, %v1241
    %1243 = vrot.lane.b32.xlu0 %v146, 40
    %v1244 = vpop.permute.xlu0 %1243
    %v1247 = vsel %vm157, %v1241, 0
    %1249 = vmatprep.subr.mxu0 0.0
    %1250 = vmatpush1.msra.mxu0 %v1244
    %1251 = vmatprep.subr.mxu0 0.0
    %1252 = vmatpush1.msra.mxu0 0.0
    %1253 = vmatprep.subr.mxu0 0.0
    %1254 = vmatpush1.msra.mxu0 0.0
    %1255 = vmatprep.subr.mxu0 0.0
    %1256 = vmatpush1.msra.mxu0 0.0
    %1257 = vmatprep.subr.mxu0 0.0
    %1258 = vmatpush1.msra.mxu0 0.0
    %1259 = vmatprep.subr.mxu0 0.0
    %1260 = vmatpush1.msra.mxu0 0.0
    %1261 = vmatprep.subr.mxu0 0.0
    %1262 = vmatpush1.msra.mxu0 0.0
    %1263 = vmatprep.subr.mxu0 0.0
    %1264 = vmatpush1.msra.mxu0 0.0
    %1265 = vmatprep.subr.mxu0 0.0
    %1266 = vmatpush1.msra.mxu0 0.0
    %1267 = vmatprep.subr.mxu0 0.0
    %1268 = vmatpush1.msra.mxu0 0.0
    %1269 = vmatprep.subr.mxu0 0.0
    %1270 = vmatpush1.msra.mxu0 0.0
    %1271 = vmatprep.subr.mxu0 0.0
    %1272 = vmatpush1.msra.mxu0 0.0
    %1273 = vmatprep.subr.mxu0 0.0
    %1274 = vmatpush1.msra.mxu0 0.0
    %1275 = vmatprep.subr.mxu0 0.0
    %1276 = vmatpush1.msra.mxu0 0.0
    %1277 = vmatprep.subr.mxu0 0.0
    %1278 = vmatpush1.msra.mxu0 0.0
    %1279 = vmatprep.subr.mxu0 0.0
    %1280 = vmatpush1.msra.mxu0 0.0
    %1281 = vmatprep.subr.mxu0 0.0
    %1282 = vmatpush1.msra.mxu0 0.0
    %1283 = vmatprep.subr.mxu0 0.0
    %1284 = vmatpush1.msra.mxu0 0.0
    %1285 = vmatprep.subr.mxu0 0.0
    %1286 = vmatpush1.msra.mxu0 0.0
    %1287 = vmatprep.subr.mxu0 0.0
    %1288 = vmatpush1.msra.mxu0 0.0
    %1289 = vmatprep.subr.mxu0 0.0
    %1290 = vmatpush1.msra.mxu0 0.0
    %1291 = vmatprep.subr.mxu0 0.0
    %1292 = vmatpush1.msra.mxu0 0.0
    %1293 = vmatprep.subr.mxu0 0.0
    %1294 = vmatpush1.msra.mxu0 0.0
    %1295 = vmatprep.subr.mxu0 0.0
    %1296 = vmatpush1.msra.mxu0 0.0
    %1297 = vmatprep.subr.mxu0 0.0
    %1298 = vmatpush1.msra.mxu0 0.0
    %1299 = vmatprep.subr.mxu0 0.0
    %1300 = vmatpush1.msra.mxu0 0.0
    %1301 = vmatprep.subr.mxu0 0.0
    %1302 = vmatpush1.msra.mxu0 0.0
    %1303 = vmatprep.subr.mxu0 0.0
    %1304 = vmatpush1.msra.mxu0 0.0
    %1305 = vmatprep.subr.mxu0 0.0
    %1306 = vmatpush1.msra.mxu0 0.0
    %1307 = vmatprep.subr.mxu0 0.0
    %1308 = vmatpush1.msra.mxu0 0.0
    %1309 = vmatprep.subr.mxu0 0.0
    %1310 = vmatpush1.msra.mxu0 0.0
    %1311 = vmatprep.subr.mxu0 0.0
    %1312 = vmatpush1.msra.mxu0 0.0
    %1313 = vmatprep.mubr.f32.mxu0 0.0
    %1314 = vmatmul.mubr.f32.gmra.mrb[0].mxu0 %v1247
    %v1315 = vpop.f32.mrb[0].mxu0
    %v1316 = vadd.f32 0.0, %v1315
    %v1317 = vpop.f32.mrb[0].mxu0
    %1318 = vdwg.mxu0
    %1319 = vrot.lane.b32.xlu0 %v131, 104
    %v1320 = vpop.permute.xlu0 %1319
    %1321 = vrot.lane.b32.xlu0 %v141, 72
    %v1322 = vpop.permute.xlu0 %1321
    %v1323 = vsel %vm157, %v1320, 0
    %v1325 = vsel %vm157, %v1322, 0
    %1327 = vmatprep.subr.mxu0 0.0
    %1328 = vmatpush1.xpose.msra.mxu0 %v1325
    %1329 = vmatprep.subr.mxu0 0.0
    %1330 = vmatpush1.xpose.msra.mxu0 0.0
    %1331 = vmatprep.subr.mxu0 0.0
    %1332 = vmatpush1.xpose.msra.mxu0 0.0
    %1333 = vmatprep.subr.mxu0 0.0
    %1334 = vmatpush1.xpose.msra.mxu0 0.0
    %1335 = vmatprep.subr.mxu0 0.0
    %1336 = vmatpush1.xpose.msra.mxu0 0.0
    %1337 = vmatprep.subr.mxu0 0.0
    %1338 = vmatpush1.xpose.msra.mxu0 0.0
    %1339 = vmatprep.subr.mxu0 0.0
    %1340 = vmatpush1.xpose.msra.mxu0 0.0
    %1341 = vmatprep.subr.mxu0 0.0
    %1342 = vmatpush1.xpose.msra.mxu0 0.0
    %1343 = vmatprep.subr.mxu0 0.0
    %1344 = vmatpush1.xpose.msra.mxu0 0.0
    %1345 = vmatprep.subr.mxu0 0.0
    %1346 = vmatpush1.xpose.msra.mxu0 0.0
    %1347 = vmatprep.subr.mxu0 0.0
    %1348 = vmatpush1.xpose.msra.mxu0 0.0
    %1349 = vmatprep.subr.mxu0 0.0
    %1350 = vmatpush1.xpose.msra.mxu0 0.0
    %1351 = vmatprep.subr.mxu0 0.0
    %1352 = vmatpush1.xpose.msra.mxu0 0.0
    %1353 = vmatprep.subr.mxu0 0.0
    %1354 = vmatpush1.xpose.msra.mxu0 0.0
    %1355 = vmatprep.subr.mxu0 0.0
    %1356 = vmatpush1.xpose.msra.mxu0 0.0
    %1357 = vmatprep.subr.mxu0 0.0
    %1358 = vmatpush1.xpose.msra.mxu0 0.0
    %1359 = vmatprep.subr.mxu0 0.0
    %1360 = vmatpush1.xpose.msra.mxu0 0.0
    %1361 = vmatprep.subr.mxu0 0.0
    %1362 = vmatpush1.xpose.msra.mxu0 0.0
    %1363 = vmatprep.subr.mxu0 0.0
    %1364 = vmatpush1.xpose.msra.mxu0 0.0
    %1365 = vmatprep.subr.mxu0 0.0
    %1366 = vmatpush1.xpose.msra.mxu0 0.0
    %1367 = vmatprep.subr.mxu0 0.0
    %1368 = vmatpush1.xpose.msra.mxu0 0.0
    %1369 = vmatprep.subr.mxu0 0.0
    %1370 = vmatpush1.xpose.msra.mxu0 0.0
    %1371 = vmatprep.subr.mxu0 0.0
    %1372 = vmatpush1.xpose.msra.mxu0 0.0
    %1373 = vmatprep.subr.mxu0 0.0
    %1374 = vmatpush1.xpose.msra.mxu0 0.0
    %1375 = vmatprep.subr.mxu0 0.0
    %1376 = vmatpush1.xpose.msra.mxu0 0.0
    %1377 = vmatprep.subr.mxu0 0.0
    %1378 = vmatpush1.xpose.msra.mxu0 0.0
    %1379 = vmatprep.subr.mxu0 0.0
    %1380 = vmatpush1.xpose.msra.mxu0 0.0
    %1381 = vmatprep.subr.mxu0 0.0
    %1382 = vmatpush1.xpose.msra.mxu0 0.0
    %1383 = vmatprep.subr.mxu0 0.0
    %1384 = vmatpush1.xpose.msra.mxu0 0.0
    %1385 = vmatprep.subr.mxu0 0.0
    %1386 = vmatpush1.xpose.msra.mxu0 0.0
    %1387 = vmatprep.subr.mxu0 0.0
    %1388 = vmatpush1.xpose.msra.mxu0 0.0
    %1389 = vmatprep.subr.mxu0 0.0
    %1390 = vmatpush1.xpose.msra.mxu0 0.0
    %1391 = vmatprep.mubr.f32.mxu0 0.0
    %1392 = vmatmul.mubr.f32.gmra.mrb[0].mxu0 %v1323
    %v1393 = vpop.f32.mrb[0].mxu0
    %v1394 = vadd.f32 0.0, %v1393
    %v1395 = vpop.f32.mrb[0].mxu0
    %1396 = vdwg.mxu0
    %v1397 = vsel %vm157, %v1394, -inf
    %1398 = vmax.xlane.f32.xlu0 %v1397
    %v1399 = vpop.xlane.xlu0 %1398
    %v1400 = vsub.f32 %v1394, %v1399
    %v1401 = vmul.f32 %v1400, 1.442695
    %v1402 = vpow.pop %v1401
    %v1403 = vsel %vm157, %v1402, 0.0
    %1404 = vadd.xlane.f32.xlu0 %v1403
    %v1405 = vpop.xlane.xlu0 %1404
    %v1406 = vrcp.pop %v1405
    %v1407 = vmul.f32 %v1402, %v1406
    %v1408 = vadd.f32 %v1076, %v1407
    %1409 = vrot.lane.b32.xlu0 %v151, 40
    %v1410 = vpop.permute.xlu0 %1409
    %v1413 = vsel %vm157, %v1407, 0
    %1415 = vmatprep.subr.mxu0 0.0
    %1416 = vmatpush1.msra.mxu0 %v1410
    %1417 = vmatprep.subr.mxu0 0.0
    %1418 = vmatpush1.msra.mxu0 0.0
    %1419 = vmatprep.subr.mxu0 0.0
    %1420 = vmatpush1.msra.mxu0 0.0
    %1421 = vmatprep.subr.mxu0 0.0
    %1422 = vmatpush1.msra.mxu0 0.0
    %1423 = vmatprep.subr.mxu0 0.0
    %1424 = vmatpush1.msra.mxu0 0.0
    %1425 = vmatprep.subr.mxu0 0.0
    %1426 = vmatpush1.msra.mxu0 0.0
    %1427 = vmatprep.subr.mxu0 0.0
    %1428 = vmatpush1.msra.mxu0 0.0
    %1429 = vmatprep.subr.mxu0 0.0
    %1430 = vmatpush1.msra.mxu0 0.0
    %1431 = vmatprep.subr.mxu0 0.0
    %1432 = vmatpush1.msra.mxu0 0.0
    %1433 = vmatprep.subr.mxu0 0.0
    %1434 = vmatpush1.msra.mxu0 0.0
    %1435 = vmatprep.subr.mxu0 0.0
    %1436 = vmatpush1.msra.mxu0 0.0
    %1437 = vmatprep.subr.mxu0 0.0
    %1438 = vmatpush1.msra.mxu0 0.0
    %1439 = vmatprep.subr.mxu0 0.0
    %1440 = vmatpush1.msra.mxu0 0.0
    %1441 = vmatprep.subr.mxu0 0.0
    %1442 = vmatpush1.msra.mxu0 0.0
    %1443 = vmatprep.subr.mxu0 0.0
    %1444 = vmatpush1.msra.mxu0 0.0
    %1445 = vmatprep.subr.mxu0 0.0
    %1446 = vmatpush1.msra.mxu0 0.0
    %1447 = vmatprep.subr.mxu0 0.0
    %1448 = vmatpush1.msra.mxu0 0.0
    %1449 = vmatprep.subr.mxu0 0.0
    %1450 = vmatpush1.msra.mxu0 0.0
    %1451 = vmatprep.subr.mxu0 0.0
    %1452 = vmatpush1.msra.mxu0 0.0
    %1453 = vmatprep.subr.mxu0 0.0
    %1454 = vmatpush1.msra.mxu0 0.0
    %1455 = vmatprep.subr.mxu0 0.0
    %1456 = vmatpush1.msra.mxu0 0.0
    %1457 = vmatprep.subr.mxu0 0.0
    %1458 = vmatpush1.msra.mxu0 0.0
    %1459 = vmatprep.subr.mxu0 0.0
    %1460 = vmatpush1.msra.mxu0 0.0
    %1461 = vmatprep.subr.mxu0 0.0
    %1462 = vmatpush1.msra.mxu0 0.0
    %1463 = vmatprep.subr.mxu0 0.0
    %1464 = vmatpush1.msra.mxu0 0.0
    %1465 = vmatprep.subr.mxu0 0.0
    %1466 = vmatpush1.msra.mxu0 0.0
    %1467 = vmatprep.subr.mxu0 0.0
    %1468 = vmatpush1.msra.mxu0 0.0
    %1469 = vmatprep.subr.mxu0 0.0
    %1470 = vmatpush1.msra.mxu0 0.0
    %1471 = vmatprep.subr.mxu0 0.0
    %1472 = vmatpush1.msra.mxu0 0.0
    %1473 = vmatprep.subr.mxu0 0.0
    %1474 = vmatpush1.msra.mxu0 0.0
    %1475 = vmatprep.subr.mxu0 0.0
    %1476 = vmatpush1.msra.mxu0 0.0
    %1477 = vmatprep.subr.mxu0 0.0
    %1478 = vmatpush1.msra.mxu0 0.0
    %1479 = vmatprep.mubr.f32.mxu0 0.0
    %1480 = vmatmul.mubr.f32.gmra.mrb[0].mxu0 %v1413
    %v1481 = vpop.f32.mrb[0].mxu0
    %v1482 = vadd.f32 0.0, %v1481
    %v1483 = vpop.f32.mrb[0].mxu0
    %1484 = vdwg.mxu0
    %1487 = vrot.lane.b32.xlu0 %v652, 8
    %v1488 = vpop.permute.xlu0 %1487
    %1489 = vrot.lane.b32.xlu0 %v818, 8
    %v1490 = vpop.permute.xlu0 %1489
    %1495 = vrot.lane.b32.xlu0 %v984, 16
    %v1496 = vpop.permute.xlu0 %1495
    %1497 = vrot.lane.b32.xlu0 %v1150, 16
    %v1498 = vpop.permute.xlu0 %1497
    %1503 = vrot.lane.b32.xlu0 %v1316, 24
    %v1504 = vpop.permute.xlu0 %1503
    %1505 = vrot.lane.b32.xlu0 %v1482, 24
    %v1506 = vpop.permute.xlu0 %1505
    %v1509 = vsel %vm157, %v319, %v1488
    %v1510 = vsel %vm157, %v486, %v1490
    %vm1511 = vcmask 130048
    %v1512 = vsel %vm1511, %v1509, %v1496
    %v1513 = vsel %vm1511, %v1510, %v1498
    %vm1514 = vcmask 195584
    %v1515 = vsel %vm1514, %v1512, %v1504
    %v1516 = vsel %vm1514, %v1513, %v1506
    %v1517 = vld [vmem:[%s3] sm:$0xff]
    %v1518 = vld [vmem:[%s3 + $0x8] sm:$0xff]
    %v1519 = vld [vmem:[%s3 + $0x10] sm:$0xff]
    %v1520 = vld [vmem:[%s3 + $0x18] sm:$0xff]
    %v1521 = vld [vmem:[%s4] sm:$0x1]
    %v1523 = vlaneseq
    %v1524 = vshrl.u32 %v1523, 7
    %v1525 = vsub.s32 0, %v1524
    %v1526 = vrot.slane %v1521, %v1525
    %v1529 = vsel %vm40, %v1515, 0
    %v1532 = vsel %vm40, %v1516, 0
    %1534 = vmatprep.subr.mxu0 0.0
    %1535 = vmatpush1.msra.mxu0 %v1517
    %1536 = vmatprep.subr.mxu0 0.0
    %1537 = vmatpush1.msra.mxu0 %v1518
    %1538 = vmatprep.subr.mxu0 0.0
    %1539 = vmatpush1.msra.mxu0 %v1519
    %1540 = vmatprep.subr.mxu0 0.0
    %1541 = vmatpush1.msra.mxu0 %v1520
    %1542 = vmatprep.subr.mxu0 0.0
    %1543 = vmatpush1.msra.mxu0 0.0
    %1544 = vmatprep.subr.mxu0 0.0
    %1545 = vmatpush1.msra.mxu0 0.0
    %1546 = vmatprep.subr.mxu0 0.0
    %1547 = vmatpush1.msra.mxu0 0.0
    %1548 = vmatprep.subr.mxu0 0.0
    %1549 = vmatpush1.msra.mxu0 0.0
    %1550 = vmatprep.subr.mxu0 0.0
    %1551 = vmatpush1.msra.mxu0 0.0
    %1552 = vmatprep.subr.mxu0 0.0
    %1553 = vmatpush1.msra.mxu0 0.0
    %1554 = vmatprep.subr.mxu0 0.0
    %1555 = vmatpush1.msra.mxu0 0.0
    %1556 = vmatprep.subr.mxu0 0.0
    %1557 = vmatpush1.msra.mxu0 0.0
    %1558 = vmatprep.subr.mxu0 0.0
    %1559 = vmatpush1.msra.mxu0 0.0
    %1560 = vmatprep.subr.mxu0 0.0
    %1561 = vmatpush1.msra.mxu0 0.0
    %1562 = vmatprep.subr.mxu0 0.0
    %1563 = vmatpush1.msra.mxu0 0.0
    %1564 = vmatprep.subr.mxu0 0.0
    %1565 = vmatpush1.msra.mxu0 0.0
    %1566 = vmatprep.subr.mxu0 0.0
    %1567 = vmatpush1.msra.mxu0 0.0
    %1568 = vmatprep.subr.mxu0 0.0
    %1569 = vmatpush1.msra.mxu0 0.0
    %1570 = vmatprep.subr.mxu0 0.0
    %1571 = vmatpush1.msra.mxu0 0.0
    %1572 = vmatprep.subr.mxu0 0.0
    %1573 = vmatpush1.msra.mxu0 0.0
    %1574 = vmatprep.subr.mxu0 0.0
    %1575 = vmatpush1.msra.mxu0 0.0
    %1576 = vmatprep.subr.mxu0 0.0
    %1577 = vmatpush1.msra.mxu0 0.0
    %1578 = vmatprep.subr.mxu0 0.0
    %1579 = vmatpush1.msra.mxu0 0.0
    %1580 = vmatprep.subr.mxu0 0.0
    %1581 = vmatpush1.msra.mxu0 0.0
    %1582 = vmatprep.subr.mxu0 0.0
    %1583 = vmatpush1.msra.mxu0 0.0
    %1584 = vmatprep.subr.mxu0 0.0
    %1585 = vmatpush1.msra.mxu0 0.0
    %1586 = vmatprep.subr.mxu0 0.0
    %1587 = vmatpush1.msra.mxu0 0.0
    %1588 = vmatprep.subr.mxu0 0.0
    %1589 = vmatpush1.msra.mxu0 0.0
    %1590 = vmatprep.subr.mxu0 0.0
    %1591 = vmatpush1.msra.mxu0 0.0
    %1592 = vmatprep.subr.mxu0 0.0
    %1593 = vmatpush1.msra.mxu0 0.0
    %1594 = vmatprep.subr.mxu0 0.0
    %1595 = vmatpush1.msra.mxu0 0.0
    %1596 = vmatprep.subr.mxu0 0.0
    %1597 = vmatpush1.msra.mxu0 0.0
    %1598 = vmatprep.mubr.f32.mxu0 0.0
    %1599 = vmatmul.mubr.f32.gmra.mrb[0].mxu0 %v1529
    %v1600 = vpop.f32.mrb[0].mxu0
    %v1601 = vadd.f32 %v1526, %v1600
    %v1602 = vpop.f32.mrb[0].mxu0
    %1603 = vmatprep.mubr.f32.mxu0 0.0
    %1604 = vmatmul.mubr.f32.gmra.mrb[0].mxu0 %v1532
    %v1605 = vpop.f32.mrb[0].mxu0
    %v1606 = vadd.f32 %v1526, %v1605
    %v1607 = vpop.f32.mrb[0].mxu0
    %1608 = vdwg.mxu0
    %1609 = vst.msk [vmem:[%s5] sm:$0xff] %vm40, %v1601
    %1610 = vst.msk [vmem:[%s5 + $0x8] sm:$0xff] %vm40, %v1606
    %v1611 = vmul.f32 %v1242, 0.25
    %1612 = vst.msk [vmem:[#allocation2] sm:$0xff] %vm157, %v1611
    %v1613 = vmul.f32 %v1408, 0.25
    %s1614 = scalar_lea.vmem [#allocation2], 8
    %1615 = vst.msk [vmem:[%s1614] sm:$0xff] %vm157, %v1613
    // Predicated region
    $region22: #{multihead_attention_forward.1} parent=1 // pred_check
      _
    $region23: #{multihead_attention_forward.1} parent=1 // pred_check_branch
      %1617 = sbr.rel (0) target = $region25
    $region24: #{multihead_attention_forward.1} parent=1 // pred_region
      _
    $region25: #{multihead_attention_forward.1} parent=1 // pred_fallthru
      _
    // Predicated region
    $region26: #{multihead_attention_forward.1} parent=1 // pred_check
      _
    $region27: #{multihead_attention_forward.1} parent=1 // pred_check_branch
      %1619 = sbr.rel (0) target = $region29
    $region28: #{multihead_attention_forward.1} parent=1 // pred_region
      %s1621 = ssub.s32 256, 256
      %1622 = vsyncadd [#allocation3], %s1621
      %s1623 = sshll.u32 [#allocation2], 4
      %s1624 = int_to_ptr.vmem [resolvable:$true] %s1623
      %1629 = dma.vmem_to_hbm [thread:$0]  %s1624, 256, %s6, [#allocation3], 128, 128, 8
    $region29: #{multihead_attention_forward.1} parent=1 // pred_fallthru
      _
    // Predicated region
    $region30: #{multihead_attention_forward.1} parent=1 // pred_check
      _
    $region31: #{multihead_attention_forward.1} parent=1 // pred_check_branch
      %1631 = sbr.rel (0) target = $region33
    $region32: #{multihead_attention_forward.1} parent=1 // pred_region
      _
    $region33: #{multihead_attention_forward.1} parent=1 // pred_fallthru
      _
    // Predicated region
    $region34: #{multihead_attention_forward.1} parent=1 // pred_check
      _
    $region35: #{multihead_attention_forward.1} parent=1 // pred_check_branch
      %1633 = sbr.rel (0) target = $region37
    $region36: #{multihead_attention_forward.1} parent=1 // pred_region
      %1634 = dma.done [#allocation3], 256
    $region37: #{multihead_attention_forward.1} parent=1 // pred_fallthru
      _
    %1635 = vsyncpa [#allocation3], 1

</llo_original>
